<compile_context>
chip_gen: v5e
topology: v5e:2x2
jax: 0.10.0
libtpu: 0.0.40
codegen_flags: <defaults>
</compile_context>

<pallas_src>
import jax
import jax.numpy as jnp
from jax.experimental import pallas as pl
from jax.experimental.pallas import tpu as pltpu


def _gaussian_kernel(x_ref, p_ref, s_ref, out_ref):
    # x_ref: (bm, D) native dtype; p_ref: (2, D) f32 [w; std^2] (resident);
    # s_ref: (2,) f32 in SMEM [bias, std_default^2]; out_ref: (2, bm) f32.
    xf = x_ref[...].astype(jnp.float32)                    # cast in VMEM (no-op for f32)
    xt = xf.T                                              # (D, bm): one XLU transpose, reused
    params = p_ref[...]                                    # (2, D)

    # Linear head on the MXU, lane-dense output: (1, D) @ (D, bm) -> (1, bm).
    y = jnp.dot(params[0:1, :], xt,
                preferred_element_type=jnp.float32,
                precision=jax.lax.Precision.HIGHEST)       # (1, bm)
    # Heteroscedastic variance, also on the (otherwise idle) MXU:
    # std^2 (1, D) @ (x^2)^T (D, bm) -> (1, bm).
    var = jnp.dot(params[1:2, :], xt * xt,
                  preferred_element_type=jnp.float32,
                  precision=jax.lax.Precision.HIGHEST)     # (1, bm)

    out_ref[...] = jnp.concatenate([y + s_ref[0], var + s_ref[1]], axis=0)


def _round_up(v, m):
    return (v + m - 1) // m * m


def gaussian_regression(x, weight, bias, std, std_default, *, bm=None):
    """x: (N, D); weight: (1, D); bias: (1,); std: (D,); std_default: scalar.

    Returns (y_pred (N, 1), var_pred (N,)) matching the PyTorch module.
    """
    N, D = x.shape

    # --- Row-tile selection (byte-sized, lane-padding aware) -----------------
    # VMEM stores the x tile lane-padded to round_up(D, 128); budget ~2 MiB per
    # x buffer.  In-flight footprint ~= 2 (double-buffer) + ~2 (x^T and (x^T)^2
    # temps) buffers of bm*round_up(D,128)*4 bytes + tiny (2, bm) outputs, i.e.
    # ~8 MiB at bm=4096 / D<=128 -> fits every generation's scoped-VMEM default
    # (v5e 16 MiB, v6e/v7x 32 MiB; v7x physical is only 64 MiB) with headroom.
    if bm is None:
        lane_d = _round_up(D, 128)
        row_bytes = lane_d * 4                       # f32 worst case after in-kernel cast
        target_buf_bytes = 2 * 1024 * 1024           # ~2 MiB per x buffer
        bm = max(128, (target_buf_bytes // row_bytes) // 128 * 128)
        bm = min(bm, _round_up(N, 128))              # never larger than (rounded) N
        # Keep >= 2 grid steps when possible so both v7x TensorCores get work.
        if pl.cdiv(N, bm) < 2 and N > 128:
            bm = max(128, _round_up(pl.cdiv(N, 2), 128))
    # TODO(synk): for very large D (~20K+), add a second "arbitrary" grid axis
    # over D with a VMEM f32 accumulator instead of relying on a single D tile.
    # TODO(synk): if the upstream producer can emit x feature-major (D, N), a
    # (D, bm) x BlockSpec avoids the ~4x lane-padding HBM waste when D << 128.

    n_tiles = pl.cdiv(N, bm)

    params = jnp.concatenate(
        [weight.reshape(1, D).astype(jnp.float32),
         jnp.square(std.astype(jnp.float32)).reshape(1, D)],
        axis=0)                                                   # (2, D): [w; std^2]
    scalars = jnp.stack([
        bias.reshape(()).astype(jnp.float32),
        jnp.square(jnp.asarray(std_default, jnp.float32).reshape(())),
    ])                                                            # (2,): [b, std_default^2]

    cost = pl.CostEstimate(
        flops=5 * N * D,                       # 2 matmuls + elementwise square
        transcendentals=0,
        bytes_accessed=N * D * x.dtype.itemsize + 2 * D * 4 + 2 * N * 4,
    )

    out = pl.pallas_call(
        _gaussian_kernel,
        out_shape=jax.ShapeDtypeStruct((2, N), jnp.float32),
        grid_spec=pltpu.PrefetchScalarGridSpec(
            num_scalar_prefetch=0,
            grid=(n_tiles,),
            in_specs=[
                pl.BlockSpec((bm, D), lambda i: (i, 0)),              # x row tile (native dtype)
                pl.BlockSpec((2, D), lambda i: (0, 0)),               # [w; std^2] (resident)
                pl.BlockSpec(memory_space=pltpu.MemorySpace.SMEM),    # [bias, std_default^2]
            ],
            out_specs=pl.BlockSpec((2, bm), lambda i: (0, i)),        # fused lane-dense rows
        ),
        compiler_params=pltpu.CompilerParams(
            dimension_semantics=("parallel",),
        ),
        cost_estimate=cost,
    )(x, params, scalars)

    y_pred = out[0, :].reshape(N, 1)
    var_pred = out[1, :]
    return y_pred, var_pred


if __name__ == "__main__":
    # Small, deterministic setup: batch N=1000 (exercises the ragged last tile
    # and a 2-tile grid), input_features D=13 (Boston housing feature count).
    N, D = 1000, 13
    key = jax.random.PRNGKey(0)
    kx, kw, kb, ks = jax.random.split(key, 4)

    x = jax.random.normal(kx, (N, D), dtype=jnp.float32)

    # Deterministic parameter init (synthetic; mirrors nn.Linear(D, 1) + std params).
    weight = jax.random.normal(kw, (1, D), dtype=jnp.float32) * (1.0 / jnp.sqrt(D))
    bias = jax.random.normal(kb, (1,), dtype=jnp.float32) * 0.1
    std = jnp.ones((D,), dtype=jnp.float32) + 0.01 * jax.random.normal(ks, (D,), dtype=jnp.float32)
    std_default = jnp.float32(1.0)

    y_pred, var_pred = gaussian_regression(x, weight, bias, std, std_default)
    jax.block_until_ready((y_pred, var_pred))

    # Pure-JAX reference check (highest precision to mirror PyTorch f32 math).
    y_ref = jnp.matmul(x, weight.T, precision=jax.lax.Precision.HIGHEST) + bias   # (N, 1)
    var_ref = (x ** 2 * std ** 2).sum(axis=1) + std_default ** 2                   # (N,)

    assert y_pred.shape == (N, 1) and var_pred.shape == (N,)
    assert jnp.allclose(y_pred, y_ref, atol=1e-4, rtol=1e-4)
    assert jnp.allclose(var_pred, var_ref, atol=1e-4, rtol=1e-4)

    print("KERNEL_OK")
</pallas_src>

<mosaic_0001>
module attributes {stable_mosaic.version = 11 : i64} {
  func.func @_gaussian_kernel(%arg0: i32, %arg1: memref<512x13xf32, #tpu.memory_space<vmem>>, %arg2: memref<2x13xf32, #tpu.memory_space<vmem>>, %arg3: memref<2xf32, #tpu.memory_space<smem>>, %arg4: memref<2x512xf32, #tpu.memory_space<vmem>>) attributes {dimension_semantics = [#tpu.dimension_semantics<parallel>], iteration_bounds = array<i64: 2>, scalar_prefetch = 0 : i64, scratch_operands = 0 : i64, tpu.core_type = #tpu.core_type<tc>, window_params = [{transform_indices = @transform_0, window_bounds = array<i64: 512, 13>}, {pipeline_mode = #tpu.pipeline_mode<synchronous>, transform_indices = @transform_1, window_bounds = array<i64: 2, 13>}, {transform_indices = @transform_2, window_bounds = array<i64: 2>}, {transform_indices = @transform_3, window_bounds = array<i64: 2, 512>}]} {
    %c0 = arith.constant 0 : index
    %c0_0 = arith.constant 0 : index
    %0 = vector.load %arg1[%c0, %c0_0] : memref<512x13xf32, #tpu.memory_space<vmem>>, vector<512x13xf32>
    %1 = tpu.transpose %0, [1, 0] : vector<512x13xf32> -> vector<13x512xf32>
    %c0_1 = arith.constant 0 : index
    %c0_2 = arith.constant 0 : index
    %2 = vector.load %arg2[%c0_1, %c0_2] : memref<2x13xf32, #tpu.memory_space<vmem>>, vector<2x13xf32>
    %3 = vector.extract_strided_slice %2 {offsets = [0, 0], sizes = [1, 13], strides = [1, 1]} : vector<2x13xf32> to vector<1x13xf32>
    %cst = arith.constant dense<0.000000e+00> : vector<1x512xf32>
    %4 = tpu.matmul %3, %1, %cst {dimension_numbers = #tpu.dot_dimension_numbers<[1], [0], [0], [1], [0, 0, 1, 1], [], []>, precision = #tpu.contract_precision<fp32>} : vector<1x13xf32>, vector<13x512xf32>, vector<1x512xf32> -> vector<1x512xf32>
    %5 = vector.extract_strided_slice %2 {offsets = [1, 0], sizes = [1, 13], strides = [1, 1]} : vector<2x13xf32> to vector<1x13xf32>
    %6 = arith.mulf %1, %1 : vector<13x512xf32>
    %cst_3 = arith.constant dense<0.000000e+00> : vector<1x512xf32>
    %7 = tpu.matmul %5, %6, %cst_3 {dimension_numbers = #tpu.dot_dimension_numbers<[1], [0], [0], [1], [0, 0, 1, 1], [], []>, precision = #tpu.contract_precision<fp32>} : vector<1x13xf32>, vector<13x512xf32>, vector<1x512xf32> -> vector<1x512xf32>
    %c0_4 = arith.constant 0 : index
    %8 = memref.load %arg3[%c0_4] : memref<2xf32, #tpu.memory_space<smem>>
    %9 = vector.broadcast %8 : f32 to vector<1x512xf32>
    %10 = arith.addf %4, %9 : vector<1x512xf32>
    %c1 = arith.constant 1 : index
    %11 = memref.load %arg3[%c1] : memref<2xf32, #tpu.memory_space<smem>>
    %12 = vector.broadcast %11 : f32 to vector<1x512xf32>
    %13 = arith.addf %7, %12 : vector<1x512xf32>
    %14 = tpu.concatenate %10, %13 in 0 : vector<1x512xf32>, vector<1x512xf32> -> vector<2x512xf32>
    %c0_5 = arith.constant 0 : index
    %c0_6 = arith.constant 0 : index
    %15 = vector.load %arg4[%c0_5, %c0_6] : memref<2x512xf32, #tpu.memory_space<vmem>>, vector<2x512xf32>
    tpu.vector_store %arg4[%c0_5, %c0_6], %14 {strides = array<i32>} : memref<2x512xf32, #tpu.memory_space<vmem>>, vector<2x512xf32>,
    return
  }
  func.func @transform_0(%arg0: i32) -> (i32, i32) {
    %c0_i32 = arith.constant 0 : i32
    %c0_i32_0 = arith.constant 0 : i32
    return %arg0, %c0_i32 : i32, i32
  }
  func.func @transform_1(%arg0: i32) -> (i32, i32) {
    %c0_i32 = arith.constant 0 : i32
    %c0_i32_0 = arith.constant 0 : i32
    %c0_i32_1 = arith.constant 0 : i32
    return %c0_i32, %c0_i32_0 : i32, i32
  }
  func.func @transform_2(%arg0: i32) -> i32 {
    %c0_i32 = arith.constant 0 : i32
    %c0_i32_0 = arith.constant 0 : i32
    return %c0_i32 : i32
  }
  func.func @transform_3(%arg0: i32) -> (i32, i32) {
    %c0_i32 = arith.constant 0 : i32
    %c0_i32_0 = arith.constant 0 : i32
    return %c0_i32, %arg0 : i32, i32
  }
}

</mosaic_0001>

<llo_original>
// kernel: tpu_custom_call.1
$region0: #{tpu_custom_call.1}
  #allocation0 [shape = 'u32[]', space=smem, size = 0x4, offset = 0x4, fixed_abs, tag = 'smem constant byte address 0x4 - core index']
  #allocation1 [shape = 'u32[72,128]{1,0:T(1,128)}', space=vmem, size = 0x9000, scoped, tag = 'internal scratch']
  %s0 = inlined_call_operand.vmem [shape: f32[1000,13], index: 0, kind: input, shape index: {}]
  %s1 = inlined_call_operand.vmem [shape: f32[2,13], index: 1, kind: input, shape index: {}]
  %s2 = inlined_call_operand.vmem [shape: f32[2], index: 2, kind: input, shape index: {}]
  %s3 = inlined_call_operand.hbm [shape: f32[2,1000], index: 3, kind: output, shape index: {}]
  %s4 = sld [smem:[#allocation0]]
  $region49: #{tpu_custom_call.1} parent=0
    _
  %s6 = ssub.s32 1, %s4
  %s7 = scalar_select 0, %s6, %s4
  $region1: #{tpu_custom_call.1} parent=0
    #allocation2 [shape = 'u8[512]{0}', space=smem, size = 0x200, scoped, tag = 'input window, operand 2, single buffered']
    #allocation3 [shape = 's32[2]{0}', space=sflag, size = 0x8, scoped, tag = 'scoped memory for tpu_custom_call.1']
    #allocation4 [shape = 's32[2]{0}', space=sflag, size = 0x8, scoped, tag = 'scoped memory for tpu_custom_call.1']
    #allocation5 [shape = 'u8[8192]{0}', space=vmem, size = 0x2000, scoped, tag = 'output window, operand 0']
    %8 = vsyncpa [#allocation4], 0
    %9 = vsyncpa [#allocation3], 0
    %s10 = scalar_lea.sflag [#allocation3], 1
    %11 = vsyncpa %s10, 0
    loop: start=0, step=1, limit=4
    $region2: #{tpu_custom_call.1} parent=1 // loop_pre_header
      _
    $region3: #{tpu_custom_call.1} parent=1 // loop_header
      %s13 = sphi 0, %s17
      %p14 = scmp.ge.s32.totalorder %s13, 4
      %s23 = sphi 0, %s25
      %s26 = sphi 0, %s23
      %s27 = sphi 0, %s26
      %s43 = sphi 0, %s27
      %s47 = sphi 0, %s47
      %s49 = sphi 0, %s47
      %s50 = sphi 0, %s49
      %s64 = sphi 0, %s50
      %s68 = sphi 0, %s68
      %s70 = sphi 0, %s68
      %s71 = sphi 0, %s70
      %s85 = sphi 0, %s71
      %s91 = sphi 0, %s93
      %s94 = sphi 0, %s91
      %s95 = sphi 0, %s94
      %s111 = sphi 0, %s95
    $region4: #{tpu_custom_call.1} parent=1 // loop_header_branch
      %16 = sbr.rel (%p14) target = $region8
    $region5: #{tpu_custom_call.1} parent=1 // loop_body
      %s18 = ssub.s32 %s13, 1
      %s19 = ssub.s32 %s13, 2
      %s20 = sadd.s32 %s13, 1
      %s21 = ssub.s32 %s13, %s20
      %p22 = scmp.eq.s32.totalorder %s21, 0
      %s24 = sadd.s32 %s23, 1
      %s25 = scalar_select %p22, %s23, %s24
      %p28 = pneg %p22
      %p29 = scmp.eq.s32.totalorder %s13, 1
      %p30 = por %p28, %p29
      %p31 = scmp.ne.s32.totalorder %s23, %s26
      %p32 = scmp.eq.s32.totalorder %s13, 0
      %p33 = por %p31, %p32
      %p34 = scmp.ne.s32.totalorder %s23, %s26
      %p35 = scmp.eq.s32.totalorder %s18, 1
      %p36 = por %p34, %p35
      %p37 = scmp.ne.s32.totalorder %s26, %s27
      %p38 = scmp.eq.s32.totalorder %s18, 0
      %p39 = por %p37, %p38
      %p40 = scmp.ne.s32.totalorder %s26, %s27
      %p41 = scmp.eq.s32.totalorder %s19, 1
      %p42 = por %p40, %p41
      %p44 = scmp.ne.s32.totalorder %s27, %s43
      %p45 = scmp.eq.s32.totalorder %s19, 0
      %p46 = por %p44, %p45
      %s48 = sadd.s32 %s47, 1
      %p51 = scmp.eq.s32.totalorder %s13, 1
      %p52 = scmp.ne.s32.totalorder %s47, %s49
      %p53 = scmp.eq.s32.totalorder %s13, 0
      %p54 = por %p52, %p53
      %p55 = scmp.ne.s32.totalorder %s47, %s49
      %p56 = scmp.eq.s32.totalorder %s18, 1
      %p57 = por %p55, %p56
      %p58 = scmp.ne.s32.totalorder %s49, %s50
      %p59 = scmp.eq.s32.totalorder %s18, 0
      %p60 = por %p58, %p59
      %p61 = scmp.ne.s32.totalorder %s49, %s50
      %p62 = scmp.eq.s32.totalorder %s19, 1
      %p63 = por %p61, %p62
      %p65 = scmp.ne.s32.totalorder %s50, %s64
      %p66 = scmp.eq.s32.totalorder %s19, 0
      %p67 = por %p65, %p66
      %s69 = sadd.s32 %s68, 1
      %p72 = scmp.eq.s32.totalorder %s13, 1
      %p73 = scmp.ne.s32.totalorder %s68, %s70
      %p74 = scmp.eq.s32.totalorder %s13, 0
      %p75 = por %p73, %p74
      %p76 = scmp.ne.s32.totalorder %s68, %s70
      %p77 = scmp.eq.s32.totalorder %s18, 1
      %p78 = por %p76, %p77
      %p79 = scmp.ne.s32.totalorder %s70, %s71
      %p80 = scmp.eq.s32.totalorder %s18, 0
      %p81 = por %p79, %p80
      %p82 = scmp.ne.s32.totalorder %s70, %s71
      %p83 = scmp.eq.s32.totalorder %s19, 1
      %p84 = por %p82, %p83
      %p86 = scmp.ne.s32.totalorder %s71, %s85
      %p87 = scmp.eq.s32.totalorder %s19, 0
      %p88 = por %p86, %p87
      %s89 = ssub.s32 %s13, %s20
      %p90 = scmp.eq.s32.totalorder %s89, 0
      %s92 = sadd.s32 %s91, 1
      %s93 = scalar_select %p90, %s91, %s92
      %p96 = pneg %p90
      %p97 = scmp.eq.s32.totalorder %s13, 1
      %p98 = por %p96, %p97
      %p99 = scmp.ne.s32.totalorder %s91, %s94
      %p100 = scmp.eq.s32.totalorder %s13, 0
      %p101 = por %p99, %p100
      %p102 = scmp.ne.s32.totalorder %s91, %s94
      %p103 = scmp.eq.s32.totalorder %s18, 1
      %p104 = por %p102, %p103
      %p105 = scmp.ne.s32.totalorder %s94, %s95
      %p106 = scmp.eq.s32.totalorder %s18, 0
      %p107 = por %p105, %p106
      %p108 = scmp.ne.s32.totalorder %s94, %s95
      %p109 = scmp.eq.s32.totalorder %s19, 1
      %p110 = por %p108, %p109
      %p112 = scmp.ne.s32.totalorder %s95, %s111
      %p113 = scmp.eq.s32.totalorder %s19, 0
      %p114 = por %p112, %p113
      %p115 = scmp.le.s32.totalorder 1, %s13
      %p116 = scmp.lt.s32.totalorder %s13, 3
      %p117 = pnand %p115, %p116
      %p118 = pneg %p117
      // Predicated region
      $region9: #{tpu_custom_call.1} parent=5 // pred_check
        _
      $region10: #{tpu_custom_call.1} parent=5 // pred_check_branch
        %120 = sbr.rel (%p117) target = $region12
      $region11: #{tpu_custom_call.1} parent=5 // pred_region
        %s121 = ssub.s32 %s13, 1
        // Predicated region
        $region13: #{tpu_custom_call.1} parent=11 // pred_check
          %p122 = pneg %p60
        $region14: #{tpu_custom_call.1} parent=11 // pred_check_branch
          %124 = sbr.rel (%p122) target = $region16
        $region15: #{tpu_custom_call.1} parent=11 // pred_region
          _
        $region16: #{tpu_custom_call.1} parent=11 // pred_fallthru
          _
        // Predicated region
        $region17: #{tpu_custom_call.1} parent=11 // pred_check
          %p125 = pneg %p81
        $region18: #{tpu_custom_call.1} parent=11 // pred_check_branch
          %127 = sbr.rel (%p125) target = $region20
        $region19: #{tpu_custom_call.1} parent=11 // pred_region
          %129 = vsyncadd [#allocation4], 0
          %s131 = sshll.u32 %s2, 4
          %s132 = int_to_ptr.vmem [resolvable:$true] %s131
          %134 = dma.vmem_to_smem %s132, 16, [#allocation2], [#allocation4]
        $region20: #{tpu_custom_call.1} parent=11 // pred_fallthru
          _
      $region12: #{tpu_custom_call.1} parent=5 // pred_fallthru
        _
      %p135 = scmp.lt.s32.totalorder %s13, 2
      // Predicated region
      $region21: #{tpu_custom_call.1} parent=5 // pred_check
        %p136 = pneg %p135
      $region22: #{tpu_custom_call.1} parent=5 // pred_check_branch
        %138 = sbr.rel (%p136) target = $region24
      $region23: #{tpu_custom_call.1} parent=5 // pred_region
        // Predicated region
        $region25: #{tpu_custom_call.1} parent=23 // pred_check
          %p139 = pneg %p33
        $region26: #{tpu_custom_call.1} parent=23 // pred_check_branch
          %141 = sbr.rel (%p139) target = $region28
        $region27: #{tpu_custom_call.1} parent=23 // pred_region
          %s142 = smul.u32 64, %s13
          %s143 = ssub.s32 125, %s142
          %p144 = scmp.lt.s32.totalorder %s143, 64
          %s145 = scalar_select %p144, %s143, 64
          %s146 = smul.u32 8, %s145
          %p147 = scmp.lt.s32.totalorder %s142, 124
          %s148 = scalar_select %p147, %s142, 124
          %s149 = smul.addr %s148, 8
          %s150 = scalar_lea.vmem %s0, %s149
          %s151 = smul.u32 64, %s13
          %s152 = ssub.s32 125, %s151
          %p153 = scmp.lt.s32.totalorder %s152, 64
          %s154 = scalar_select %p153, %s152, 64
          %s155 = smul.u32 8, %s154
        $region28: #{tpu_custom_call.1} parent=23 // pred_fallthru
          _
      $region24: #{tpu_custom_call.1} parent=5 // pred_fallthru
        _
      %p156 = scmp.le.s32.totalorder 1, %s13
      %p157 = scmp.lt.s32.totalorder %s13, 3
      %p158 = pnand %p156, %p157
      %p159 = pneg %p158
      // Predicated region
      $region29: #{tpu_custom_call.1} parent=5 // pred_check
        _
      $region30: #{tpu_custom_call.1} parent=5 // pred_check_branch
        %161 = sbr.rel (%p158) target = $region32
      $region31: #{tpu_custom_call.1} parent=5 // pred_region
        %s162 = ssub.s32 %s13, 1
        // Predicated region
        $region33: #{tpu_custom_call.1} parent=31 // pred_check
          %p163 = pneg %p81
        $region34: #{tpu_custom_call.1} parent=31 // pred_check_branch
          %165 = sbr.rel (%p163) target = $region36
        $region35: #{tpu_custom_call.1} parent=31 // pred_region
          %167 = dma.done [#allocation4], 16
        $region36: #{tpu_custom_call.1} parent=31 // pred_fallthru
          _
        %168 = sfence
        %s169 = smul.u32 64, %s18
        %s170 = ssub.s32 125, %s169
        %p171 = scmp.lt.s32.totalorder %s170, 64
        %s172 = scalar_select %p171, %s170, 64
        %s173 = smul.u32 8, %s172
        %p174 = scmp.lt.s32.totalorder %s169, 124
        %s175 = scalar_select %p174, %s169, 124
        %s176 = smul.addr %s175, 8
        %s177 = scalar_lea.vmem %s0, %s176
        %p178 = pneg %p39
        %p179 = pneg %p36
        %p180 = pneg %p60
        %p181 = pneg %p57
        %p182 = pneg %p81
        %p183 = pneg %p78
        %p184 = pneg %p107
        %p185 = pneg %p104
        %s186 = sand.u32 %s94, 1
        %s187 = scalar_lea.sflag [#allocation3], %s186
        %s188 = sand.u32 %s94, 1
        %s189 = smul.addr %s188, 8
        %s190 = scalar_lea.vmem [#allocation5], %s189
        %s191 = smul.u32 64, %s18
        %s192 = ssub.s32 125, %s191
        %p193 = scmp.lt.s32.totalorder %s192, 64
        %s194 = scalar_select %p193, %s192, 64
        %s195 = smul.u32 8, %s194
        %p196 = scmp.lt.s32.totalorder %s191, 124
        %s197 = scalar_select %p196, %s191, 124
        %s198 = smul.addr %s197, 8
        %s199 = scalar_lea.vmem %s0, %s198
        %s200 = smul.u32 64, %s18
        %s201 = ssub.s32 125, %s200
        %p202 = scmp.lt.s32.totalorder %s201, 64
        %s203 = scalar_select %p202, %s201, 64
        %s204 = smul.u32 8, %s203
        %s205 = smul.u32 4, %s18
        %v206 = vld [vmem:[%s199] sm:$0xff]
        %v207 = vld [vmem:[%s199 + $0x8] sm:$0xff]
        %v208 = vld [vmem:[%s199 + $0x10] sm:$0xff]
        %v209 = vld [vmem:[%s199 + $0x18] sm:$0xff]
        %v210 = vld [vmem:[%s199 + $0x20] sm:$0xff]
        %v211 = vld [vmem:[%s199 + $0x28] sm:$0xff]
        %v212 = vld [vmem:[%s199 + $0x30] sm:$0xff]
        %v213 = vld [vmem:[%s199 + $0x38] sm:$0xff]
        %v214 = vld [vmem:[%s199 + $0x40] sm:$0xff]
        %v215 = vld [vmem:[%s199 + $0x48] sm:$0xff]
        %v216 = vld [vmem:[%s199 + $0x50] sm:$0xff]
        %v217 = vld [vmem:[%s199 + $0x58] sm:$0xff]
        %v218 = vld [vmem:[%s199 + $0x60] sm:$0xff]
        %v219 = vld [vmem:[%s199 + $0x68] sm:$0xff]
        %v220 = vld [vmem:[%s199 + $0x70] sm:$0xff]
        %v221 = vld [vmem:[%s199 + $0x78] sm:$0xff]
        %v222 = vld [vmem:[%s199 + $0x80] sm:$0xff]
        %v223 = vld [vmem:[%s199 + $0x88] sm:$0xff]
        %v224 = vld [vmem:[%s199 + $0x90] sm:$0xff]
        %v225 = vld [vmem:[%s199 + $0x98] sm:$0xff]
        %v226 = vld [vmem:[%s199 + $0xa0] sm:$0xff]
        %v227 = vld [vmem:[%s199 + $0xa8] sm:$0xff]
        %v228 = vld [vmem:[%s199 + $0xb0] sm:$0xff]
        %v229 = vld [vmem:[%s199 + $0xb8] sm:$0xff]
        %v230 = vld [vmem:[%s199 + $0xc0] sm:$0xff]
        %v231 = vld [vmem:[%s199 + $0xc8] sm:$0xff]
        %v232 = vld [vmem:[%s199 + $0xd0] sm:$0xff]
        %v233 = vld [vmem:[%s199 + $0xd8] sm:$0xff]
        %v234 = vld [vmem:[%s199 + $0xe0] sm:$0xff]
        %v235 = vld [vmem:[%s199 + $0xe8] sm:$0xff]
        %v236 = vld [vmem:[%s199 + $0xf0] sm:$0xff]
        %v237 = vld [vmem:[%s199 + $0xf8] sm:$0xff]
        %v238 = vld [vmem:[%s199 + $0x100] sm:$0xff]
        %v239 = vld [vmem:[%s199 + $0x108] sm:$0xff]
        %v240 = vld [vmem:[%s199 + $0x110] sm:$0xff]
        %v241 = vld [vmem:[%s199 + $0x118] sm:$0xff]
        %v242 = vld [vmem:[%s199 + $0x120] sm:$0xff]
        %v243 = vld [vmem:[%s199 + $0x128] sm:$0xff]
        %v244 = vld [vmem:[%s199 + $0x130] sm:$0xff]
        %v245 = vld [vmem:[%s199 + $0x138] sm:$0xff]
        %v246 = vld [vmem:[%s199 + $0x140] sm:$0xff]
        %v247 = vld [vmem:[%s199 + $0x148] sm:$0xff]
        %v248 = vld [vmem:[%s199 + $0x150] sm:$0xff]
        %v249 = vld [vmem:[%s199 + $0x158] sm:$0xff]
        %v250 = vld [vmem:[%s199 + $0x160] sm:$0xff]
        %v251 = vld [vmem:[%s199 + $0x168] sm:$0xff]
        %v252 = vld [vmem:[%s199 + $0x170] sm:$0xff]
        %v253 = vld [vmem:[%s199 + $0x178] sm:$0xff]
        %v254 = vld [vmem:[%s199 + $0x180] sm:$0xff]
        %v255 = vld [vmem:[%s199 + $0x188] sm:$0xff]
        %v256 = vld [vmem:[%s199 + $0x190] sm:$0xff]
        %v257 = vld [vmem:[%s199 + $0x198] sm:$0xff]
        %v258 = vld [vmem:[%s199 + $0x1a0] sm:$0xff]
        %v259 = vld [vmem:[%s199 + $0x1a8] sm:$0xff]
        %v260 = vld [vmem:[%s199 + $0x1b0] sm:$0xff]
        %v261 = vld [vmem:[%s199 + $0x1b8] sm:$0xff]
        %v262 = vld [vmem:[%s199 + $0x1c0] sm:$0xff]
        %v263 = vld [vmem:[%s199 + $0x1c8] sm:$0xff]
        %v264 = vld [vmem:[%s199 + $0x1d0] sm:$0xff]
        %v265 = vld [vmem:[%s199 + $0x1d8] sm:$0xff]
        %v266 = vld [vmem:[%s199 + $0x1e0] sm:$0xff]
        %v267 = vld [vmem:[%s199 + $0x1e8] sm:$0xff]
        %v268 = vld [vmem:[%s199 + $0x1f0] sm:$0xff]
        %v269 = vld [vmem:[%s199 + $0x1f8] sm:$0xff]
        %270 = vxpose.xlu0.b32.start [1/16] %v206, 128
        %271 = vxpose.xlu0.b32.cont [2/16] %v207, 128
        %272 = vxpose.xlu0.b32.cont [3/16] %v208, 128
        %273 = vxpose.xlu0.b32.cont [4/16] %v209, 128
        %274 = vxpose.xlu0.b32.cont [5/16] %v210, 128
        %275 = vxpose.xlu0.b32.cont [6/16] %v211, 128
        %276 = vxpose.xlu0.b32.cont [7/16] %v212, 128
        %277 = vxpose.xlu0.b32.cont [8/16] %v213, 128
        %278 = vxpose.xlu0.b32.cont [9/16] %v214, 128
        %279 = vxpose.xlu0.b32.cont [10/16] %v215, 128
        %280 = vxpose.xlu0.b32.cont [11/16] %v216, 128
        %281 = vxpose.xlu0.b32.cont [12/16] %v217, 128
        %282 = vxpose.xlu0.b32.cont [13/16] %v218, 128
        %283 = vxpose.xlu0.b32.cont [14/16] %v219, 128
        %284 = vxpose.xlu0.b32.cont [15/16] %v220, 128
        %285 = vxpose.xlu0.b32.end [16/16] %v221, 128
        %v286 = vpop.trf.xlu0
        %v287 = vpop.trf.xlu0
        %v288 = vpop.trf.xlu0
        %v289 = vpop.trf.xlu0
        %v290 = vpop.trf.xlu0
        %v291 = vpop.trf.xlu0
        %v292 = vpop.trf.xlu0
        %v293 = vpop.trf.xlu0
        %v294 = vpop.trf.xlu0
        %v295 = vpop.trf.xlu0
        %v296 = vpop.trf.xlu0
        %v297 = vpop.trf.xlu0
        %v298 = vpop.trf.xlu0
        %v299 = vpop.trf.xlu0
        %v300 = vpop.trf.xlu0
        %v301 = vpop.trf.xlu0
        %302 = vxpose.xlu0.b32.start [1/16] %v222, 128
        %303 = vxpose.xlu0.b32.cont [2/16] %v223, 128
        %304 = vxpose.xlu0.b32.cont [3/16] %v224, 128
        %305 = vxpose.xlu0.b32.cont [4/16] %v225, 128
        %306 = vxpose.xlu0.b32.cont [5/16] %v226, 128
        %307 = vxpose.xlu0.b32.cont [6/16] %v227, 128
        %308 = vxpose.xlu0.b32.cont [7/16] %v228, 128
        %309 = vxpose.xlu0.b32.cont [8/16] %v229, 128
        %310 = vxpose.xlu0.b32.cont [9/16] %v230, 128
        %311 = vxpose.xlu0.b32.cont [10/16] %v231, 128
        %312 = vxpose.xlu0.b32.cont [11/16] %v232, 128
        %313 = vxpose.xlu0.b32.cont [12/16] %v233, 128
        %314 = vxpose.xlu0.b32.cont [13/16] %v234, 128
        %315 = vxpose.xlu0.b32.cont [14/16] %v235, 128
        %316 = vxpose.xlu0.b32.cont [15/16] %v236, 128
        %317 = vxpose.xlu0.b32.end [16/16] %v237, 128
        %v318 = vpop.trf.xlu0
        %v319 = vpop.trf.xlu0
        %v320 = vpop.trf.xlu0
        %v321 = vpop.trf.xlu0
        %v322 = vpop.trf.xlu0
        %v323 = vpop.trf.xlu0
        %v324 = vpop.trf.xlu0
        %v325 = vpop.trf.xlu0
        %v326 = vpop.trf.xlu0
        %v327 = vpop.trf.xlu0
        %v328 = vpop.trf.xlu0
        %v329 = vpop.trf.xlu0
        %v330 = vpop.trf.xlu0
        %v331 = vpop.trf.xlu0
        %v332 = vpop.trf.xlu0
        %v333 = vpop.trf.xlu0
        %334 = vxpose.xlu0.b32.start [1/16] %v238, 128
        %335 = vxpose.xlu0.b32.cont [2/16] %v239, 128
        %336 = vxpose.xlu0.b32.cont [3/16] %v240, 128
        %337 = vxpose.xlu0.b32.cont [4/16] %v241, 128
        %338 = vxpose.xlu0.b32.cont [5/16] %v242, 128
        %339 = vxpose.xlu0.b32.cont [6/16] %v243, 128
        %340 = vxpose.xlu0.b32.cont [7/16] %v244, 128
        %341 = vxpose.xlu0.b32.cont [8/16] %v245, 128
        %342 = vxpose.xlu0.b32.cont [9/16] %v246, 128
        %343 = vxpose.xlu0.b32.cont [10/16] %v247, 128
        %344 = vxpose.xlu0.b32.cont [11/16] %v248, 128
        %345 = vxpose.xlu0.b32.cont [12/16] %v249, 128
        %346 = vxpose.xlu0.b32.cont [13/16] %v250, 128
        %347 = vxpose.xlu0.b32.cont [14/16] %v251, 128
        %348 = vxpose.xlu0.b32.cont [15/16] %v252, 128
        %349 = vxpose.xlu0.b32.end [16/16] %v253, 128
        %v350 = vpop.trf.xlu0
        %v351 = vpop.trf.xlu0
        %v352 = vpop.trf.xlu0
        %v353 = vpop.trf.xlu0
        %v354 = vpop.trf.xlu0
        %v355 = vpop.trf.xlu0
        %v356 = vpop.trf.xlu0
        %v357 = vpop.trf.xlu0
        %v358 = vpop.trf.xlu0
        %v359 = vpop.trf.xlu0
        %v360 = vpop.trf.xlu0
        %v361 = vpop.trf.xlu0
        %v362 = vpop.trf.xlu0
        %v363 = vpop.trf.xlu0
        %v364 = vpop.trf.xlu0
        %v365 = vpop.trf.xlu0
        %366 = vxpose.xlu0.b32.start [1/16] %v254, 128
        %367 = vxpose.xlu0.b32.cont [2/16] %v255, 128
        %368 = vxpose.xlu0.b32.cont [3/16] %v256, 128
        %369 = vxpose.xlu0.b32.cont [4/16] %v257, 128
        %370 = vxpose.xlu0.b32.cont [5/16] %v258, 128
        %371 = vxpose.xlu0.b32.cont [6/16] %v259, 128
        %372 = vxpose.xlu0.b32.cont [7/16] %v260, 128
        %373 = vxpose.xlu0.b32.cont [8/16] %v261, 128
        %374 = vxpose.xlu0.b32.cont [9/16] %v262, 128
        %375 = vxpose.xlu0.b32.cont [10/16] %v263, 128
        %376 = vxpose.xlu0.b32.cont [11/16] %v264, 128
        %377 = vxpose.xlu0.b32.cont [12/16] %v265, 128
        %378 = vxpose.xlu0.b32.cont [13/16] %v266, 128
        %379 = vxpose.xlu0.b32.cont [14/16] %v267, 128
        %380 = vxpose.xlu0.b32.cont [15/16] %v268, 128
        %381 = vxpose.xlu0.b32.end [16/16] %v269, 128
        %v382 = vpop.trf.xlu0
        %v383 = vpop.trf.xlu0
        %v384 = vpop.trf.xlu0
        %v385 = vpop.trf.xlu0
        %v386 = vpop.trf.xlu0
        %v387 = vpop.trf.xlu0
        %v388 = vpop.trf.xlu0
        %v389 = vpop.trf.xlu0
        %v390 = vpop.trf.xlu0
        %v391 = vpop.trf.xlu0
        %v392 = vpop.trf.xlu0
        %v393 = vpop.trf.xlu0
        %v394 = vpop.trf.xlu0
        %v395 = vpop.trf.xlu0
        %v396 = vpop.trf.xlu0
        %v397 = vpop.trf.xlu0
        %v398 = vld [vmem:[%s1] sm:$0x3]
        %v399 = vmul.f32 %v286, %v286
        %v400 = vmul.f32 %v318, %v318
        %v401 = vmul.f32 %v350, %v350
        %v402 = vmul.f32 %v382, %v382
        %v403 = vmul.f32 %v287, %v287
        %v404 = vmul.f32 %v319, %v319
        %v405 = vmul.f32 %v351, %v351
        %v406 = vmul.f32 %v383, %v383
        %s407 = sld [smem:[#allocation2]]
        %v408 = vstv %s407
        %vm409 = vcmask 105472
        %v411 = vsel %vm409, %v398, 0
        %vm413 = vcmask 1044480
        %v415 = vsel %vm413, %v287, 0
        %v418 = vsel %vm413, %v319, 0
        %v421 = vsel %vm413, %v351, 0
        %v424 = vsel %vm413, %v383, 0
        %426 = vmatpush.msra.mxu0 0.0
        %427 = vmatpush.msra.mxu0 0.0
        %428 = vmatpush.msra.mxu0 0.0
        %429 = vmatpush.msra.mxu0 0.0
        %430 = vmatpush.msra.mxu0 0.0
        %431 = vmatpush.msra.mxu0 0.0
        %432 = vmatpush.msra.mxu0 0.0
        %433 = vmatpush.msra.mxu0 0.0
        %434 = vmatpush.msra.mxu0 0.0
        %435 = vmatpush.msra.mxu0 0.0
        %436 = vmatpush.msra.mxu0 0.0
        %437 = vmatpush.msra.mxu0 0.0
        %438 = vmatpush.msra.mxu0 0.0
        %439 = vmatpush.msra.mxu0 0.0
        %v440 = vand.u32 %v415, 4294901760
        %441 = vmatpush.msra.mxu0 %v440
        %v442 = vand.u32 %v286, 4294901760
        %443 = vmatpush.msra.mxu0 %v442
        %v444 = vand.u32 %v411, 4294901760
        %v445 = vsub.f32 %v411, %v444
        %v446 = vand.u32 %v445, 4294901760
        %v447 = vsub.f32 %v445, %v446
        %v448 = vand.u32 %v447, 4294901760
        %449 = vmatmul.f32.gmra.mxu0 %v448
        %v450 = vpop.f32.mrf.mxu0
        %v451 = vadd.f32 %v408, %v450
        %452 = vdwg.mxu0
        %453 = vmatpush.msra.mxu0 0.0
        %454 = vmatpush.msra.mxu0 0.0
        %455 = vmatpush.msra.mxu0 0.0
        %456 = vmatpush.msra.mxu0 0.0
        %457 = vmatpush.msra.mxu0 0.0
        %458 = vmatpush.msra.mxu0 0.0
        %459 = vmatpush.msra.mxu0 0.0
        %460 = vmatpush.msra.mxu0 0.0
        %461 = vmatpush.msra.mxu0 0.0
        %462 = vmatpush.msra.mxu0 0.0
        %463 = vmatpush.msra.mxu0 0.0
        %464 = vmatpush.msra.mxu0 0.0
        %465 = vmatpush.msra.mxu0 0.0
        %466 = vmatpush.msra.mxu0 0.0
        %v467 = vand.u32 %v415, 4294901760
        %v468 = vsub.f32 %v415, %v467
        %v469 = vand.u32 %v468, 4294901760
        %v470 = vsub.f32 %v468, %v469
        %v471 = vand.u32 %v470, 4294901760
        %472 = vmatpush.msra.mxu0 %v471
        %v473 = vand.u32 %v286, 4294901760
        %v474 = vsub.f32 %v286, %v473
        %v475 = vand.u32 %v474, 4294901760
        %v476 = vsub.f32 %v474, %v475
        %v477 = vand.u32 %v476, 4294901760
        %478 = vmatpush.msra.mxu0 %v477
        %v479 = vand.u32 %v411, 4294901760
        %480 = vmatmul.f32.gmra.mxu0 %v479
        %v481 = vpop.f32.mrf.mxu0
        %v482 = vadd.f32 %v451, %v481
        %483 = vdwg.mxu0
        %484 = vmatpush.msra.mxu0 0.0
        %485 = vmatpush.msra.mxu0 0.0
        %486 = vmatpush.msra.mxu0 0.0
        %487 = vmatpush.msra.mxu0 0.0
        %488 = vmatpush.msra.mxu0 0.0
        %489 = vmatpush.msra.mxu0 0.0
        %490 = vmatpush.msra.mxu0 0.0
        %491 = vmatpush.msra.mxu0 0.0
        %492 = vmatpush.msra.mxu0 0.0
        %493 = vmatpush.msra.mxu0 0.0
        %494 = vmatpush.msra.mxu0 0.0
        %495 = vmatpush.msra.mxu0 0.0
        %496 = vmatpush.msra.mxu0 0.0
        %497 = vmatpush.msra.mxu0 0.0
        %v498 = vand.u32 %v415, 4294901760
        %v499 = vsub.f32 %v415, %v498
        %500 = vmatpush.msra.mxu0 %v499
        %v501 = vand.u32 %v286, 4294901760
        %v502 = vsub.f32 %v286, %v501
        %503 = vmatpush.msra.mxu0 %v502
        %v504 = vand.u32 %v411, 4294901760
        %v505 = vsub.f32 %v411, %v504
        %506 = vmatmul.f32.gmra.mxu0 %v505
        %v507 = vpop.f32.mrf.mxu0
        %v508 = vadd.f32 %v482, %v507
        %509 = vdwg.mxu0
        %510 = vmatpush.msra.mxu0 0.0
        %511 = vmatpush.msra.mxu0 0.0
        %512 = vmatpush.msra.mxu0 0.0
        %513 = vmatpush.msra.mxu0 0.0
        %514 = vmatpush.msra.mxu0 0.0
        %515 = vmatpush.msra.mxu0 0.0
        %516 = vmatpush.msra.mxu0 0.0
        %517 = vmatpush.msra.mxu0 0.0
        %518 = vmatpush.msra.mxu0 0.0
        %519 = vmatpush.msra.mxu0 0.0
        %520 = vmatpush.msra.mxu0 0.0
        %521 = vmatpush.msra.mxu0 0.0
        %522 = vmatpush.msra.mxu0 0.0
        %523 = vmatpush.msra.mxu0 0.0
        %v524 = vand.u32 %v415, 4294901760
        %525 = vmatpush.msra.mxu0 %v524
        %v526 = vand.u32 %v286, 4294901760
        %527 = vmatpush.msra.mxu0 %v526
        %v528 = vand.u32 %v411, 4294901760
        %v529 = vsub.f32 %v411, %v528
        %v530 = vand.u32 %v529, 4294901760
        %531 = vmatmul.f32.gmra.mxu0 %v530
        %v532 = vpop.f32.mrf.mxu0
        %v533 = vadd.f32 %v508, %v532
        %534 = vdwg.mxu0
        %535 = vmatpush.msra.mxu0 0.0
        %536 = vmatpush.msra.mxu0 0.0
        %537 = vmatpush.msra.mxu0 0.0
        %538 = vmatpush.msra.mxu0 0.0
        %539 = vmatpush.msra.mxu0 0.0
        %540 = vmatpush.msra.mxu0 0.0
        %541 = vmatpush.msra.mxu0 0.0
        %542 = vmatpush.msra.mxu0 0.0
        %543 = vmatpush.msra.mxu0 0.0
        %544 = vmatpush.msra.mxu0 0.0
        %545 = vmatpush.msra.mxu0 0.0
        %546 = vmatpush.msra.mxu0 0.0
        %547 = vmatpush.msra.mxu0 0.0
        %548 = vmatpush.msra.mxu0 0.0
        %v549 = vand.u32 %v415, 4294901760
        %v550 = vsub.f32 %v415, %v549
        %v551 = vand.u32 %v550, 4294901760
        %552 = vmatpush.msra.mxu0 %v551
        %v553 = vand.u32 %v286, 4294901760
        %v554 = vsub.f32 %v286, %v553
        %v555 = vand.u32 %v554, 4294901760
        %556 = vmatpush.msra.mxu0 %v555
        %v557 = vand.u32 %v411, 4294901760
        %558 = vmatmul.f32.gmra.mxu0 %v557
        %v559 = vpop.f32.mrf.mxu0
        %v560 = vadd.f32 %v533, %v559
        %561 = vdwg.mxu0
        %562 = vmatpush.msra.mxu0 0.0
        %563 = vmatpush.msra.mxu0 0.0
        %564 = vmatpush.msra.mxu0 0.0
        %565 = vmatpush.msra.mxu0 0.0
        %566 = vmatpush.msra.mxu0 0.0
        %567 = vmatpush.msra.mxu0 0.0
        %568 = vmatpush.msra.mxu0 0.0
        %569 = vmatpush.msra.mxu0 0.0
        %570 = vmatpush.msra.mxu0 0.0
        %571 = vmatpush.msra.mxu0 0.0
        %572 = vmatpush.msra.mxu0 0.0
        %573 = vmatpush.msra.mxu0 0.0
        %574 = vmatpush.msra.mxu0 0.0
        %575 = vmatpush.msra.mxu0 0.0
        %v576 = vand.u32 %v415, 4294901760
        %577 = vmatpush.msra.mxu0 %v576
        %v578 = vand.u32 %v286, 4294901760
        %579 = vmatpush.msra.mxu0 %v578
        %v580 = vand.u32 %v411, 4294901760
        %581 = vmatmul.f32.gmra.mxu0 %v580
        %v582 = vpop.f32.mrf.mxu0
        %v583 = vadd.f32 %v560, %v582
        %584 = vdwg.mxu0
        %585 = vmatpush.msra.mxu0 0.0
        %586 = vmatpush.msra.mxu0 0.0
        %587 = vmatpush.msra.mxu0 0.0
        %588 = vmatpush.msra.mxu0 0.0
        %589 = vmatpush.msra.mxu0 0.0
        %590 = vmatpush.msra.mxu0 0.0
        %591 = vmatpush.msra.mxu0 0.0
        %592 = vmatpush.msra.mxu0 0.0
        %593 = vmatpush.msra.mxu0 0.0
        %594 = vmatpush.msra.mxu0 0.0
        %595 = vmatpush.msra.mxu0 0.0
        %596 = vmatpush.msra.mxu0 0.0
        %597 = vmatpush.msra.mxu0 0.0
        %598 = vmatpush.msra.mxu0 0.0
        %v599 = vand.u32 %v418, 4294901760
        %600 = vmatpush.msra.mxu0 %v599
        %v601 = vand.u32 %v318, 4294901760
        %602 = vmatpush.msra.mxu0 %v601
        %v603 = vand.u32 %v411, 4294901760
        %v604 = vsub.f32 %v411, %v603
        %v605 = vand.u32 %v604, 4294901760
        %v606 = vsub.f32 %v604, %v605
        %v607 = vand.u32 %v606, 4294901760
        %608 = vmatmul.f32.gmra.mxu0 %v607
        %v609 = vpop.f32.mrf.mxu0
        %v610 = vadd.f32 %v408, %v609
        %611 = vdwg.mxu0
        %612 = vmatpush.msra.mxu0 0.0
        %613 = vmatpush.msra.mxu0 0.0
        %614 = vmatpush.msra.mxu0 0.0
        %615 = vmatpush.msra.mxu0 0.0
        %616 = vmatpush.msra.mxu0 0.0
        %617 = vmatpush.msra.mxu0 0.0
        %618 = vmatpush.msra.mxu0 0.0
        %619 = vmatpush.msra.mxu0 0.0
        %620 = vmatpush.msra.mxu0 0.0
        %621 = vmatpush.msra.mxu0 0.0
        %622 = vmatpush.msra.mxu0 0.0
        %623 = vmatpush.msra.mxu0 0.0
        %624 = vmatpush.msra.mxu0 0.0
        %625 = vmatpush.msra.mxu0 0.0
        %v626 = vand.u32 %v418, 4294901760
        %v627 = vsub.f32 %v418, %v626
        %v628 = vand.u32 %v627, 4294901760
        %v629 = vsub.f32 %v627, %v628
        %v630 = vand.u32 %v629, 4294901760
        %631 = vmatpush.msra.mxu0 %v630
        %v632 = vand.u32 %v318, 4294901760
        %v633 = vsub.f32 %v318, %v632
        %v634 = vand.u32 %v633, 4294901760
        %v635 = vsub.f32 %v633, %v634
        %v636 = vand.u32 %v635, 4294901760
        %637 = vmatpush.msra.mxu0 %v636
        %v638 = vand.u32 %v411, 4294901760
        %639 = vmatmul.f32.gmra.mxu0 %v638
        %v640 = vpop.f32.mrf.mxu0
        %v641 = vadd.f32 %v610, %v640
        %642 = vdwg.mxu0
        %643 = vmatpush.msra.mxu0 0.0
        %644 = vmatpush.msra.mxu0 0.0
        %645 = vmatpush.msra.mxu0 0.0
        %646 = vmatpush.msra.mxu0 0.0
        %647 = vmatpush.msra.mxu0 0.0
        %648 = vmatpush.msra.mxu0 0.0
        %649 = vmatpush.msra.mxu0 0.0
        %650 = vmatpush.msra.mxu0 0.0
        %651 = vmatpush.msra.mxu0 0.0
        %652 = vmatpush.msra.mxu0 0.0
        %653 = vmatpush.msra.mxu0 0.0
        %654 = vmatpush.msra.mxu0 0.0
        %655 = vmatpush.msra.mxu0 0.0
        %656 = vmatpush.msra.mxu0 0.0
        %v657 = vand.u32 %v418, 4294901760
        %v658 = vsub.f32 %v418, %v657
        %659 = vmatpush.msra.mxu0 %v658
        %v660 = vand.u32 %v318, 4294901760
        %v661 = vsub.f32 %v318, %v660
        %662 = vmatpush.msra.mxu0 %v661
        %v663 = vand.u32 %v411, 4294901760
        %v664 = vsub.f32 %v411, %v663
        %665 = vmatmul.f32.gmra.mxu0 %v664
        %v666 = vpop.f32.mrf.mxu0
        %v667 = vadd.f32 %v641, %v666
        %668 = vdwg.mxu0
        %669 = vmatpush.msra.mxu0 0.0
        %670 = vmatpush.msra.mxu0 0.0
        %671 = vmatpush.msra.mxu0 0.0
        %672 = vmatpush.msra.mxu0 0.0
        %673 = vmatpush.msra.mxu0 0.0
        %674 = vmatpush.msra.mxu0 0.0
        %675 = vmatpush.msra.mxu0 0.0
        %676 = vmatpush.msra.mxu0 0.0
        %677 = vmatpush.msra.mxu0 0.0
        %678 = vmatpush.msra.mxu0 0.0
        %679 = vmatpush.msra.mxu0 0.0
        %680 = vmatpush.msra.mxu0 0.0
        %681 = vmatpush.msra.mxu0 0.0
        %682 = vmatpush.msra.mxu0 0.0
        %v683 = vand.u32 %v418, 4294901760
        %684 = vmatpush.msra.mxu0 %v683
        %v685 = vand.u32 %v318, 4294901760
        %686 = vmatpush.msra.mxu0 %v685
        %v687 = vand.u32 %v411, 4294901760
        %v688 = vsub.f32 %v411, %v687
        %v689 = vand.u32 %v688, 4294901760
        %690 = vmatmul.f32.gmra.mxu0 %v689
        %v691 = vpop.f32.mrf.mxu0
        %v692 = vadd.f32 %v667, %v691
        %693 = vdwg.mxu0
        %694 = vmatpush.msra.mxu0 0.0
        %695 = vmatpush.msra.mxu0 0.0
        %696 = vmatpush.msra.mxu0 0.0
        %697 = vmatpush.msra.mxu0 0.0
        %698 = vmatpush.msra.mxu0 0.0
        %699 = vmatpush.msra.mxu0 0.0
        %700 = vmatpush.msra.mxu0 0.0
        %701 = vmatpush.msra.mxu0 0.0
        %702 = vmatpush.msra.mxu0 0.0
        %703 = vmatpush.msra.mxu0 0.0
        %704 = vmatpush.msra.mxu0 0.0
        %705 = vmatpush.msra.mxu0 0.0
        %706 = vmatpush.msra.mxu0 0.0
        %707 = vmatpush.msra.mxu0 0.0
        %v708 = vand.u32 %v418, 4294901760
        %v709 = vsub.f32 %v418, %v708
        %v710 = vand.u32 %v709, 4294901760
        %711 = vmatpush.msra.mxu0 %v710
        %v712 = vand.u32 %v318, 4294901760
        %v713 = vsub.f32 %v318, %v712
        %v714 = vand.u32 %v713, 4294901760
        %715 = vmatpush.msra.mxu0 %v714
        %v716 = vand.u32 %v411, 4294901760
        %717 = vmatmul.f32.gmra.mxu0 %v716
        %v718 = vpop.f32.mrf.mxu0
        %v719 = vadd.f32 %v692, %v718
        %720 = vdwg.mxu0
        %721 = vmatpush.msra.mxu0 0.0
        %722 = vmatpush.msra.mxu0 0.0
        %723 = vmatpush.msra.mxu0 0.0
        %724 = vmatpush.msra.mxu0 0.0
        %725 = vmatpush.msra.mxu0 0.0
        %726 = vmatpush.msra.mxu0 0.0
        %727 = vmatpush.msra.mxu0 0.0
        %728 = vmatpush.msra.mxu0 0.0
        %729 = vmatpush.msra.mxu0 0.0
        %730 = vmatpush.msra.mxu0 0.0
        %731 = vmatpush.msra.mxu0 0.0
        %732 = vmatpush.msra.mxu0 0.0
        %733 = vmatpush.msra.mxu0 0.0
        %734 = vmatpush.msra.mxu0 0.0
        %v735 = vand.u32 %v418, 4294901760
        %736 = vmatpush.msra.mxu0 %v735
        %v737 = vand.u32 %v318, 4294901760
        %738 = vmatpush.msra.mxu0 %v737
        %v739 = vand.u32 %v411, 4294901760
        %740 = vmatmul.f32.gmra.mxu0 %v739
        %v741 = vpop.f32.mrf.mxu0
        %v742 = vadd.f32 %v719, %v741
        %743 = vdwg.mxu0
        %744 = vmatpush.msra.mxu0 0.0
        %745 = vmatpush.msra.mxu0 0.0
        %746 = vmatpush.msra.mxu0 0.0
        %747 = vmatpush.msra.mxu0 0.0
        %748 = vmatpush.msra.mxu0 0.0
        %749 = vmatpush.msra.mxu0 0.0
        %750 = vmatpush.msra.mxu0 0.0
        %751 = vmatpush.msra.mxu0 0.0
        %752 = vmatpush.msra.mxu0 0.0
        %753 = vmatpush.msra.mxu0 0.0
        %754 = vmatpush.msra.mxu0 0.0
        %755 = vmatpush.msra.mxu0 0.0
        %756 = vmatpush.msra.mxu0 0.0
        %757 = vmatpush.msra.mxu0 0.0
        %v758 = vand.u32 %v421, 4294901760
        %759 = vmatpush.msra.mxu0 %v758
        %v760 = vand.u32 %v350, 4294901760
        %761 = vmatpush.msra.mxu0 %v760
        %v762 = vand.u32 %v411, 4294901760
        %v763 = vsub.f32 %v411, %v762
        %v764 = vand.u32 %v763, 4294901760
        %v765 = vsub.f32 %v763, %v764
        %v766 = vand.u32 %v765, 4294901760
        %767 = vmatmul.f32.gmra.mxu0 %v766
        %v768 = vpop.f32.mrf.mxu0
        %v769 = vadd.f32 %v408, %v768
        %770 = vdwg.mxu0
        %771 = vmatpush.msra.mxu0 0.0
        %772 = vmatpush.msra.mxu0 0.0
        %773 = vmatpush.msra.mxu0 0.0
        %774 = vmatpush.msra.mxu0 0.0
        %775 = vmatpush.msra.mxu0 0.0
        %776 = vmatpush.msra.mxu0 0.0
        %777 = vmatpush.msra.mxu0 0.0
        %778 = vmatpush.msra.mxu0 0.0
        %779 = vmatpush.msra.mxu0 0.0
        %780 = vmatpush.msra.mxu0 0.0
        %781 = vmatpush.msra.mxu0 0.0
        %782 = vmatpush.msra.mxu0 0.0
        %783 = vmatpush.msra.mxu0 0.0
        %784 = vmatpush.msra.mxu0 0.0
        %v785 = vand.u32 %v421, 4294901760
        %v786 = vsub.f32 %v421, %v785
        %v787 = vand.u32 %v786, 4294901760
        %v788 = vsub.f32 %v786, %v787
        %v789 = vand.u32 %v788, 4294901760
        %790 = vmatpush.msra.mxu0 %v789
        %v791 = vand.u32 %v350, 4294901760
        %v792 = vsub.f32 %v350, %v791
        %v793 = vand.u32 %v792, 4294901760
        %v794 = vsub.f32 %v792, %v793
        %v795 = vand.u32 %v794, 4294901760
        %796 = vmatpush.msra.mxu0 %v795
        %v797 = vand.u32 %v411, 4294901760
        %798 = vmatmul.f32.gmra.mxu0 %v797
        %v799 = vpop.f32.mrf.mxu0
        %v800 = vadd.f32 %v769, %v799
        %801 = vdwg.mxu0
        %802 = vmatpush.msra.mxu0 0.0
        %803 = vmatpush.msra.mxu0 0.0
        %804 = vmatpush.msra.mxu0 0.0
        %805 = vmatpush.msra.mxu0 0.0
        %806 = vmatpush.msra.mxu0 0.0
        %807 = vmatpush.msra.mxu0 0.0
        %808 = vmatpush.msra.mxu0 0.0
        %809 = vmatpush.msra.mxu0 0.0
        %810 = vmatpush.msra.mxu0 0.0
        %811 = vmatpush.msra.mxu0 0.0
        %812 = vmatpush.msra.mxu0 0.0
        %813 = vmatpush.msra.mxu0 0.0
        %814 = vmatpush.msra.mxu0 0.0
        %815 = vmatpush.msra.mxu0 0.0
        %v816 = vand.u32 %v421, 4294901760
        %v817 = vsub.f32 %v421, %v816
        %818 = vmatpush.msra.mxu0 %v817
        %v819 = vand.u32 %v350, 4294901760
        %v820 = vsub.f32 %v350, %v819
        %821 = vmatpush.msra.mxu0 %v820
        %v822 = vand.u32 %v411, 4294901760
        %v823 = vsub.f32 %v411, %v822
        %824 = vmatmul.f32.gmra.mxu0 %v823
        %v825 = vpop.f32.mrf.mxu0
        %v826 = vadd.f32 %v800, %v825
        %827 = vdwg.mxu0
        %828 = vmatpush.msra.mxu0 0.0
        %829 = vmatpush.msra.mxu0 0.0
        %830 = vmatpush.msra.mxu0 0.0
        %831 = vmatpush.msra.mxu0 0.0
        %832 = vmatpush.msra.mxu0 0.0
        %833 = vmatpush.msra.mxu0 0.0
        %834 = vmatpush.msra.mxu0 0.0
        %835 = vmatpush.msra.mxu0 0.0
        %836 = vmatpush.msra.mxu0 0.0
        %837 = vmatpush.msra.mxu0 0.0
        %838 = vmatpush.msra.mxu0 0.0
        %839 = vmatpush.msra.mxu0 0.0
        %840 = vmatpush.msra.mxu0 0.0
        %841 = vmatpush.msra.mxu0 0.0
        %v842 = vand.u32 %v421, 4294901760
        %843 = vmatpush.msra.mxu0 %v842
        %v844 = vand.u32 %v350, 4294901760
        %845 = vmatpush.msra.mxu0 %v844
        %v846 = vand.u32 %v411, 4294901760
        %v847 = vsub.f32 %v411, %v846
        %v848 = vand.u32 %v847, 4294901760
        %849 = vmatmul.f32.gmra.mxu0 %v848
        %v850 = vpop.f32.mrf.mxu0
        %v851 = vadd.f32 %v826, %v850
        %852 = vdwg.mxu0
        %853 = vmatpush.msra.mxu0 0.0
        %854 = vmatpush.msra.mxu0 0.0
        %855 = vmatpush.msra.mxu0 0.0
        %856 = vmatpush.msra.mxu0 0.0
        %857 = vmatpush.msra.mxu0 0.0
        %858 = vmatpush.msra.mxu0 0.0
        %859 = vmatpush.msra.mxu0 0.0
        %860 = vmatpush.msra.mxu0 0.0
        %861 = vmatpush.msra.mxu0 0.0
        %862 = vmatpush.msra.mxu0 0.0
        %863 = vmatpush.msra.mxu0 0.0
        %864 = vmatpush.msra.mxu0 0.0
        %865 = vmatpush.msra.mxu0 0.0
        %866 = vmatpush.msra.mxu0 0.0
        %v867 = vand.u32 %v421, 4294901760
        %v868 = vsub.f32 %v421, %v867
        %v869 = vand.u32 %v868, 4294901760
        %870 = vmatpush.msra.mxu0 %v869
        %v871 = vand.u32 %v350, 4294901760
        %v872 = vsub.f32 %v350, %v871
        %v873 = vand.u32 %v872, 4294901760
        %874 = vmatpush.msra.mxu0 %v873
        %v875 = vand.u32 %v411, 4294901760
        %876 = vmatmul.f32.gmra.mxu0 %v875
        %v877 = vpop.f32.mrf.mxu0
        %v878 = vadd.f32 %v851, %v877
        %879 = vdwg.mxu0
        %880 = vmatpush.msra.mxu0 0.0
        %881 = vmatpush.msra.mxu0 0.0
        %882 = vmatpush.msra.mxu0 0.0
        %883 = vmatpush.msra.mxu0 0.0
        %884 = vmatpush.msra.mxu0 0.0
        %885 = vmatpush.msra.mxu0 0.0
        %886 = vmatpush.msra.mxu0 0.0
        %887 = vmatpush.msra.mxu0 0.0
        %888 = vmatpush.msra.mxu0 0.0
        %889 = vmatpush.msra.mxu0 0.0
        %890 = vmatpush.msra.mxu0 0.0
        %891 = vmatpush.msra.mxu0 0.0
        %892 = vmatpush.msra.mxu0 0.0
        %893 = vmatpush.msra.mxu0 0.0
        %v894 = vand.u32 %v421, 4294901760
        %895 = vmatpush.msra.mxu0 %v894
        %v896 = vand.u32 %v350, 4294901760
        %897 = vmatpush.msra.mxu0 %v896
        %v898 = vand.u32 %v411, 4294901760
        %899 = vmatmul.f32.gmra.mxu0 %v898
        %v900 = vpop.f32.mrf.mxu0
        %v901 = vadd.f32 %v878, %v900
        %902 = vdwg.mxu0
        %903 = vmatpush.msra.mxu0 0.0
        %904 = vmatpush.msra.mxu0 0.0
        %905 = vmatpush.msra.mxu0 0.0
        %906 = vmatpush.msra.mxu0 0.0
        %907 = vmatpush.msra.mxu0 0.0
        %908 = vmatpush.msra.mxu0 0.0
        %909 = vmatpush.msra.mxu0 0.0
        %910 = vmatpush.msra.mxu0 0.0
        %911 = vmatpush.msra.mxu0 0.0
        %912 = vmatpush.msra.mxu0 0.0
        %913 = vmatpush.msra.mxu0 0.0
        %914 = vmatpush.msra.mxu0 0.0
        %915 = vmatpush.msra.mxu0 0.0
        %916 = vmatpush.msra.mxu0 0.0
        %v917 = vand.u32 %v424, 4294901760
        %918 = vmatpush.msra.mxu0 %v917
        %v919 = vand.u32 %v382, 4294901760
        %920 = vmatpush.msra.mxu0 %v919
        %v921 = vand.u32 %v411, 4294901760
        %v922 = vsub.f32 %v411, %v921
        %v923 = vand.u32 %v922, 4294901760
        %v924 = vsub.f32 %v922, %v923
        %v925 = vand.u32 %v924, 4294901760
        %926 = vmatmul.f32.gmra.mxu0 %v925
        %v927 = vpop.f32.mrf.mxu0
        %v928 = vadd.f32 %v408, %v927
        %929 = vdwg.mxu0
        %930 = vmatpush.msra.mxu0 0.0
        %931 = vmatpush.msra.mxu0 0.0
        %932 = vmatpush.msra.mxu0 0.0
        %933 = vmatpush.msra.mxu0 0.0
        %934 = vmatpush.msra.mxu0 0.0
        %935 = vmatpush.msra.mxu0 0.0
        %936 = vmatpush.msra.mxu0 0.0
        %937 = vmatpush.msra.mxu0 0.0
        %938 = vmatpush.msra.mxu0 0.0
        %939 = vmatpush.msra.mxu0 0.0
        %940 = vmatpush.msra.mxu0 0.0
        %941 = vmatpush.msra.mxu0 0.0
        %942 = vmatpush.msra.mxu0 0.0
        %943 = vmatpush.msra.mxu0 0.0
        %v944 = vand.u32 %v424, 4294901760
        %v945 = vsub.f32 %v424, %v944
        %v946 = vand.u32 %v945, 4294901760
        %v947 = vsub.f32 %v945, %v946
        %v948 = vand.u32 %v947, 4294901760
        %949 = vmatpush.msra.mxu0 %v948
        %v950 = vand.u32 %v382, 4294901760
        %v951 = vsub.f32 %v382, %v950
        %v952 = vand.u32 %v951, 4294901760
        %v953 = vsub.f32 %v951, %v952
        %v954 = vand.u32 %v953, 4294901760
        %955 = vmatpush.msra.mxu0 %v954
        %v956 = vand.u32 %v411, 4294901760
        %957 = vmatmul.f32.gmra.mxu0 %v956
        %v958 = vpop.f32.mrf.mxu0
        %v959 = vadd.f32 %v928, %v958
        %960 = vdwg.mxu0
        %961 = vmatpush.msra.mxu0 0.0
        %962 = vmatpush.msra.mxu0 0.0
        %963 = vmatpush.msra.mxu0 0.0
        %964 = vmatpush.msra.mxu0 0.0
        %965 = vmatpush.msra.mxu0 0.0
        %966 = vmatpush.msra.mxu0 0.0
        %967 = vmatpush.msra.mxu0 0.0
        %968 = vmatpush.msra.mxu0 0.0
        %969 = vmatpush.msra.mxu0 0.0
        %970 = vmatpush.msra.mxu0 0.0
        %971 = vmatpush.msra.mxu0 0.0
        %972 = vmatpush.msra.mxu0 0.0
        %973 = vmatpush.msra.mxu0 0.0
        %974 = vmatpush.msra.mxu0 0.0
        %v975 = vand.u32 %v424, 4294901760
        %v976 = vsub.f32 %v424, %v975
        %977 = vmatpush.msra.mxu0 %v976
        %v978 = vand.u32 %v382, 4294901760
        %v979 = vsub.f32 %v382, %v978
        %980 = vmatpush.msra.mxu0 %v979
        %v981 = vand.u32 %v411, 4294901760
        %v982 = vsub.f32 %v411, %v981
        %983 = vmatmul.f32.gmra.mxu0 %v982
        %v984 = vpop.f32.mrf.mxu0
        %v985 = vadd.f32 %v959, %v984
        %986 = vdwg.mxu0
        %987 = vmatpush.msra.mxu0 0.0
        %988 = vmatpush.msra.mxu0 0.0
        %989 = vmatpush.msra.mxu0 0.0
        %990 = vmatpush.msra.mxu0 0.0
        %991 = vmatpush.msra.mxu0 0.0
        %992 = vmatpush.msra.mxu0 0.0
        %993 = vmatpush.msra.mxu0 0.0
        %994 = vmatpush.msra.mxu0 0.0
        %995 = vmatpush.msra.mxu0 0.0
        %996 = vmatpush.msra.mxu0 0.0
        %997 = vmatpush.msra.mxu0 0.0
        %998 = vmatpush.msra.mxu0 0.0
        %999 = vmatpush.msra.mxu0 0.0
        %1000 = vmatpush.msra.mxu0 0.0
        %v1001 = vand.u32 %v424, 4294901760
        %1002 = vmatpush.msra.mxu0 %v1001
        %v1003 = vand.u32 %v382, 4294901760
        %1004 = vmatpush.msra.mxu0 %v1003
        %v1005 = vand.u32 %v411, 4294901760
        %v1006 = vsub.f32 %v411, %v1005
        %v1007 = vand.u32 %v1006, 4294901760
        %1008 = vmatmul.f32.gmra.mxu0 %v1007
        %v1009 = vpop.f32.mrf.mxu0
        %v1010 = vadd.f32 %v985, %v1009
        %1011 = vdwg.mxu0
        %1012 = vmatpush.msra.mxu0 0.0
        %1013 = vmatpush.msra.mxu0 0.0
        %1014 = vmatpush.msra.mxu0 0.0
        %1015 = vmatpush.msra.mxu0 0.0
        %1016 = vmatpush.msra.mxu0 0.0
        %1017 = vmatpush.msra.mxu0 0.0
        %1018 = vmatpush.msra.mxu0 0.0
        %1019 = vmatpush.msra.mxu0 0.0
        %1020 = vmatpush.msra.mxu0 0.0
        %1021 = vmatpush.msra.mxu0 0.0
        %1022 = vmatpush.msra.mxu0 0.0
        %1023 = vmatpush.msra.mxu0 0.0
        %1024 = vmatpush.msra.mxu0 0.0
        %1025 = vmatpush.msra.mxu0 0.0
        %v1026 = vand.u32 %v424, 4294901760
        %v1027 = vsub.f32 %v424, %v1026
        %v1028 = vand.u32 %v1027, 4294901760
        %1029 = vmatpush.msra.mxu0 %v1028
        %v1030 = vand.u32 %v382, 4294901760
        %v1031 = vsub.f32 %v382, %v1030
        %v1032 = vand.u32 %v1031, 4294901760
        %1033 = vmatpush.msra.mxu0 %v1032
        %v1034 = vand.u32 %v411, 4294901760
        %1035 = vmatmul.f32.gmra.mxu0 %v1034
        %v1036 = vpop.f32.mrf.mxu0
        %v1037 = vadd.f32 %v1010, %v1036
        %1038 = vdwg.mxu0
        %1039 = vmatpush.msra.mxu0 0.0
        %1040 = vmatpush.msra.mxu0 0.0
        %1041 = vmatpush.msra.mxu0 0.0
        %1042 = vmatpush.msra.mxu0 0.0
        %1043 = vmatpush.msra.mxu0 0.0
        %1044 = vmatpush.msra.mxu0 0.0
        %1045 = vmatpush.msra.mxu0 0.0
        %1046 = vmatpush.msra.mxu0 0.0
        %1047 = vmatpush.msra.mxu0 0.0
        %1048 = vmatpush.msra.mxu0 0.0
        %1049 = vmatpush.msra.mxu0 0.0
        %1050 = vmatpush.msra.mxu0 0.0
        %1051 = vmatpush.msra.mxu0 0.0
        %1052 = vmatpush.msra.mxu0 0.0
        %v1053 = vand.u32 %v424, 4294901760
        %1054 = vmatpush.msra.mxu0 %v1053
        %v1055 = vand.u32 %v382, 4294901760
        %1056 = vmatpush.msra.mxu0 %v1055
        %v1057 = vand.u32 %v411, 4294901760
        %1058 = vmatmul.f32.gmra.mxu0 %v1057
        %v1059 = vpop.f32.mrf.mxu0
        %v1060 = vadd.f32 %v1037, %v1059
        %1061 = vdwg.mxu0
        %s1062 = sld [smem:[#allocation2 + $0x1]]
        %v1063 = vstv %s1062
        %v1064 = vrot.slane %v398, 1
        %v1065 = vsel %vm409, %v1064, 0
        %v1068 = vsel %vm413, %v403, 0
        %v1071 = vsel %vm413, %v404, 0
        %v1074 = vsel %vm413, %v405, 0
        %v1077 = vsel %vm413, %v406, 0
        %1079 = vmatpush.msra.mxu0 0.0
        %1080 = vmatpush.msra.mxu0 0.0
        %1081 = vmatpush.msra.mxu0 0.0
        %1082 = vmatpush.msra.mxu0 0.0
        %1083 = vmatpush.msra.mxu0 0.0
        %1084 = vmatpush.msra.mxu0 0.0
        %1085 = vmatpush.msra.mxu0 0.0
        %1086 = vmatpush.msra.mxu0 0.0
        %1087 = vmatpush.msra.mxu0 0.0
        %1088 = vmatpush.msra.mxu0 0.0
        %1089 = vmatpush.msra.mxu0 0.0
        %1090 = vmatpush.msra.mxu0 0.0
        %1091 = vmatpush.msra.mxu0 0.0
        %1092 = vmatpush.msra.mxu0 0.0
        %v1093 = vand.u32 %v1068, 4294901760
        %1094 = vmatpush.msra.mxu0 %v1093
        %v1095 = vand.u32 %v399, 4294901760
        %1096 = vmatpush.msra.mxu0 %v1095
        %v1097 = vand.u32 %v1065, 4294901760
        %v1098 = vsub.f32 %v1065, %v1097
        %v1099 = vand.u32 %v1098, 4294901760
        %v1100 = vsub.f32 %v1098, %v1099
        %v1101 = vand.u32 %v1100, 4294901760
        %1102 = vmatmul.f32.gmra.mxu0 %v1101
        %v1103 = vpop.f32.mrf.mxu0
        %v1104 = vadd.f32 %v1063, %v1103
        %1105 = vdwg.mxu0
        %1106 = vmatpush.msra.mxu0 0.0
        %1107 = vmatpush.msra.mxu0 0.0
        %1108 = vmatpush.msra.mxu0 0.0
        %1109 = vmatpush.msra.mxu0 0.0
        %1110 = vmatpush.msra.mxu0 0.0
        %1111 = vmatpush.msra.mxu0 0.0
        %1112 = vmatpush.msra.mxu0 0.0
        %1113 = vmatpush.msra.mxu0 0.0
        %1114 = vmatpush.msra.mxu0 0.0
        %1115 = vmatpush.msra.mxu0 0.0
        %1116 = vmatpush.msra.mxu0 0.0
        %1117 = vmatpush.msra.mxu0 0.0
        %1118 = vmatpush.msra.mxu0 0.0
        %1119 = vmatpush.msra.mxu0 0.0
        %v1120 = vand.u32 %v1068, 4294901760
        %v1121 = vsub.f32 %v1068, %v1120
        %v1122 = vand.u32 %v1121, 4294901760
        %v1123 = vsub.f32 %v1121, %v1122
        %v1124 = vand.u32 %v1123, 4294901760
        %1125 = vmatpush.msra.mxu0 %v1124
        %v1126 = vand.u32 %v399, 4294901760
        %v1127 = vsub.f32 %v399, %v1126
        %v1128 = vand.u32 %v1127, 4294901760
        %v1129 = vsub.f32 %v1127, %v1128
        %v1130 = vand.u32 %v1129, 4294901760
        %1131 = vmatpush.msra.mxu0 %v1130
        %v1132 = vand.u32 %v1065, 4294901760
        %1133 = vmatmul.f32.gmra.mxu0 %v1132
        %v1134 = vpop.f32.mrf.mxu0
        %v1135 = vadd.f32 %v1104, %v1134
        %1136 = vdwg.mxu0
        %1137 = vmatpush.msra.mxu0 0.0
        %1138 = vmatpush.msra.mxu0 0.0
        %1139 = vmatpush.msra.mxu0 0.0
        %1140 = vmatpush.msra.mxu0 0.0
        %1141 = vmatpush.msra.mxu0 0.0
        %1142 = vmatpush.msra.mxu0 0.0
        %1143 = vmatpush.msra.mxu0 0.0
        %1144 = vmatpush.msra.mxu0 0.0
        %1145 = vmatpush.msra.mxu0 0.0
        %1146 = vmatpush.msra.mxu0 0.0
        %1147 = vmatpush.msra.mxu0 0.0
        %1148 = vmatpush.msra.mxu0 0.0
        %1149 = vmatpush.msra.mxu0 0.0
        %1150 = vmatpush.msra.mxu0 0.0
        %v1151 = vand.u32 %v1068, 4294901760
        %v1152 = vsub.f32 %v1068, %v1151
        %1153 = vmatpush.msra.mxu0 %v1152
        %v1154 = vand.u32 %v399, 4294901760
        %v1155 = vsub.f32 %v399, %v1154
        %1156 = vmatpush.msra.mxu0 %v1155
        %v1157 = vand.u32 %v1065, 4294901760
        %v1158 = vsub.f32 %v1065, %v1157
        %1159 = vmatmul.f32.gmra.mxu0 %v1158
        %v1160 = vpop.f32.mrf.mxu0
        %v1161 = vadd.f32 %v1135, %v1160
        %1162 = vdwg.mxu0
        %1163 = vmatpush.msra.mxu0 0.0
        %1164 = vmatpush.msra.mxu0 0.0
        %1165 = vmatpush.msra.mxu0 0.0
        %1166 = vmatpush.msra.mxu0 0.0
        %1167 = vmatpush.msra.mxu0 0.0
        %1168 = vmatpush.msra.mxu0 0.0
        %1169 = vmatpush.msra.mxu0 0.0
        %1170 = vmatpush.msra.mxu0 0.0
        %1171 = vmatpush.msra.mxu0 0.0
        %1172 = vmatpush.msra.mxu0 0.0
        %1173 = vmatpush.msra.mxu0 0.0
        %1174 = vmatpush.msra.mxu0 0.0
        %1175 = vmatpush.msra.mxu0 0.0
        %1176 = vmatpush.msra.mxu0 0.0
        %v1177 = vand.u32 %v1068, 4294901760
        %1178 = vmatpush.msra.mxu0 %v1177
        %v1179 = vand.u32 %v399, 4294901760
        %1180 = vmatpush.msra.mxu0 %v1179
        %v1181 = vand.u32 %v1065, 4294901760
        %v1182 = vsub.f32 %v1065, %v1181
        %v1183 = vand.u32 %v1182, 4294901760
        %1184 = vmatmul.f32.gmra.mxu0 %v1183
        %v1185 = vpop.f32.mrf.mxu0
        %v1186 = vadd.f32 %v1161, %v1185
        %1187 = vdwg.mxu0
        %1188 = vmatpush.msra.mxu0 0.0
        %1189 = vmatpush.msra.mxu0 0.0
        %1190 = vmatpush.msra.mxu0 0.0
        %1191 = vmatpush.msra.mxu0 0.0
        %1192 = vmatpush.msra.mxu0 0.0
        %1193 = vmatpush.msra.mxu0 0.0
        %1194 = vmatpush.msra.mxu0 0.0
        %1195 = vmatpush.msra.mxu0 0.0
        %1196 = vmatpush.msra.mxu0 0.0
        %1197 = vmatpush.msra.mxu0 0.0
        %1198 = vmatpush.msra.mxu0 0.0
        %1199 = vmatpush.msra.mxu0 0.0
        %1200 = vmatpush.msra.mxu0 0.0
        %1201 = vmatpush.msra.mxu0 0.0
        %v1202 = vand.u32 %v1068, 4294901760
        %v1203 = vsub.f32 %v1068, %v1202
        %v1204 = vand.u32 %v1203, 4294901760
        %1205 = vmatpush.msra.mxu0 %v1204
        %v1206 = vand.u32 %v399, 4294901760
        %v1207 = vsub.f32 %v399, %v1206
        %v1208 = vand.u32 %v1207, 4294901760
        %1209 = vmatpush.msra.mxu0 %v1208
        %v1210 = vand.u32 %v1065, 4294901760
        %1211 = vmatmul.f32.gmra.mxu0 %v1210
        %v1212 = vpop.f32.mrf.mxu0
        %v1213 = vadd.f32 %v1186, %v1212
        %1214 = vdwg.mxu0
        %1215 = vmatpush.msra.mxu0 0.0
        %1216 = vmatpush.msra.mxu0 0.0
        %1217 = vmatpush.msra.mxu0 0.0
        %1218 = vmatpush.msra.mxu0 0.0
        %1219 = vmatpush.msra.mxu0 0.0
        %1220 = vmatpush.msra.mxu0 0.0
        %1221 = vmatpush.msra.mxu0 0.0
        %1222 = vmatpush.msra.mxu0 0.0
        %1223 = vmatpush.msra.mxu0 0.0
        %1224 = vmatpush.msra.mxu0 0.0
        %1225 = vmatpush.msra.mxu0 0.0
        %1226 = vmatpush.msra.mxu0 0.0
        %1227 = vmatpush.msra.mxu0 0.0
        %1228 = vmatpush.msra.mxu0 0.0
        %v1229 = vand.u32 %v1068, 4294901760
        %1230 = vmatpush.msra.mxu0 %v1229
        %v1231 = vand.u32 %v399, 4294901760
        %1232 = vmatpush.msra.mxu0 %v1231
        %v1233 = vand.u32 %v1065, 4294901760
        %1234 = vmatmul.f32.gmra.mxu0 %v1233
        %v1235 = vpop.f32.mrf.mxu0
        %v1236 = vadd.f32 %v1213, %v1235
        %1237 = vdwg.mxu0
        %1238 = vmatpush.msra.mxu0 0.0
        %1239 = vmatpush.msra.mxu0 0.0
        %1240 = vmatpush.msra.mxu0 0.0
        %1241 = vmatpush.msra.mxu0 0.0
        %1242 = vmatpush.msra.mxu0 0.0
        %1243 = vmatpush.msra.mxu0 0.0
        %1244 = vmatpush.msra.mxu0 0.0
        %1245 = vmatpush.msra.mxu0 0.0
        %1246 = vmatpush.msra.mxu0 0.0
        %1247 = vmatpush.msra.mxu0 0.0
        %1248 = vmatpush.msra.mxu0 0.0
        %1249 = vmatpush.msra.mxu0 0.0
        %1250 = vmatpush.msra.mxu0 0.0
        %1251 = vmatpush.msra.mxu0 0.0
        %v1252 = vand.u32 %v1071, 4294901760
        %1253 = vmatpush.msra.mxu0 %v1252
        %v1254 = vand.u32 %v400, 4294901760
        %1255 = vmatpush.msra.mxu0 %v1254
        %v1256 = vand.u32 %v1065, 4294901760
        %v1257 = vsub.f32 %v1065, %v1256
        %v1258 = vand.u32 %v1257, 4294901760
        %v1259 = vsub.f32 %v1257, %v1258
        %v1260 = vand.u32 %v1259, 4294901760
        %1261 = vmatmul.f32.gmra.mxu0 %v1260
        %v1262 = vpop.f32.mrf.mxu0
        %v1263 = vadd.f32 %v1063, %v1262
        %1264 = vdwg.mxu0
        %1265 = vmatpush.msra.mxu0 0.0
        %1266 = vmatpush.msra.mxu0 0.0
        %1267 = vmatpush.msra.mxu0 0.0
        %1268 = vmatpush.msra.mxu0 0.0
        %1269 = vmatpush.msra.mxu0 0.0
        %1270 = vmatpush.msra.mxu0 0.0
        %1271 = vmatpush.msra.mxu0 0.0
        %1272 = vmatpush.msra.mxu0 0.0
        %1273 = vmatpush.msra.mxu0 0.0
        %1274 = vmatpush.msra.mxu0 0.0
        %1275 = vmatpush.msra.mxu0 0.0
        %1276 = vmatpush.msra.mxu0 0.0
        %1277 = vmatpush.msra.mxu0 0.0
        %1278 = vmatpush.msra.mxu0 0.0
        %v1279 = vand.u32 %v1071, 4294901760
        %v1280 = vsub.f32 %v1071, %v1279
        %v1281 = vand.u32 %v1280, 4294901760
        %v1282 = vsub.f32 %v1280, %v1281
        %v1283 = vand.u32 %v1282, 4294901760
        %1284 = vmatpush.msra.mxu0 %v1283
        %v1285 = vand.u32 %v400, 4294901760
        %v1286 = vsub.f32 %v400, %v1285
        %v1287 = vand.u32 %v1286, 4294901760
        %v1288 = vsub.f32 %v1286, %v1287
        %v1289 = vand.u32 %v1288, 4294901760
        %1290 = vmatpush.msra.mxu0 %v1289
        %v1291 = vand.u32 %v1065, 4294901760
        %1292 = vmatmul.f32.gmra.mxu0 %v1291
        %v1293 = vpop.f32.mrf.mxu0
        %v1294 = vadd.f32 %v1263, %v1293
        %1295 = vdwg.mxu0
        %1296 = vmatpush.msra.mxu0 0.0
        %1297 = vmatpush.msra.mxu0 0.0
        %1298 = vmatpush.msra.mxu0 0.0
        %1299 = vmatpush.msra.mxu0 0.0
        %1300 = vmatpush.msra.mxu0 0.0
        %1301 = vmatpush.msra.mxu0 0.0
        %1302 = vmatpush.msra.mxu0 0.0
        %1303 = vmatpush.msra.mxu0 0.0
        %1304 = vmatpush.msra.mxu0 0.0
        %1305 = vmatpush.msra.mxu0 0.0
        %1306 = vmatpush.msra.mxu0 0.0
        %1307 = vmatpush.msra.mxu0 0.0
        %1308 = vmatpush.msra.mxu0 0.0
        %1309 = vmatpush.msra.mxu0 0.0
        %v1310 = vand.u32 %v1071, 4294901760
        %v1311 = vsub.f32 %v1071, %v1310
        %1312 = vmatpush.msra.mxu0 %v1311
        %v1313 = vand.u32 %v400, 4294901760
        %v1314 = vsub.f32 %v400, %v1313
        %1315 = vmatpush.msra.mxu0 %v1314
        %v1316 = vand.u32 %v1065, 4294901760
        %v1317 = vsub.f32 %v1065, %v1316
        %1318 = vmatmul.f32.gmra.mxu0 %v1317
        %v1319 = vpop.f32.mrf.mxu0
        %v1320 = vadd.f32 %v1294, %v1319
        %1321 = vdwg.mxu0
        %1322 = vmatpush.msra.mxu0 0.0
        %1323 = vmatpush.msra.mxu0 0.0
        %1324 = vmatpush.msra.mxu0 0.0
        %1325 = vmatpush.msra.mxu0 0.0
        %1326 = vmatpush.msra.mxu0 0.0
        %1327 = vmatpush.msra.mxu0 0.0
        %1328 = vmatpush.msra.mxu0 0.0
        %1329 = vmatpush.msra.mxu0 0.0
        %1330 = vmatpush.msra.mxu0 0.0
        %1331 = vmatpush.msra.mxu0 0.0
        %1332 = vmatpush.msra.mxu0 0.0
        %1333 = vmatpush.msra.mxu0 0.0
        %1334 = vmatpush.msra.mxu0 0.0
        %1335 = vmatpush.msra.mxu0 0.0
        %v1336 = vand.u32 %v1071, 4294901760
        %1337 = vmatpush.msra.mxu0 %v1336
        %v1338 = vand.u32 %v400, 4294901760
        %1339 = vmatpush.msra.mxu0 %v1338
        %v1340 = vand.u32 %v1065, 4294901760
        %v1341 = vsub.f32 %v1065, %v1340
        %v1342 = vand.u32 %v1341, 4294901760
        %1343 = vmatmul.f32.gmra.mxu0 %v1342
        %v1344 = vpop.f32.mrf.mxu0
        %v1345 = vadd.f32 %v1320, %v1344
        %1346 = vdwg.mxu0
        %1347 = vmatpush.msra.mxu0 0.0
        %1348 = vmatpush.msra.mxu0 0.0
        %1349 = vmatpush.msra.mxu0 0.0
        %1350 = vmatpush.msra.mxu0 0.0
        %1351 = vmatpush.msra.mxu0 0.0
        %1352 = vmatpush.msra.mxu0 0.0
        %1353 = vmatpush.msra.mxu0 0.0
        %1354 = vmatpush.msra.mxu0 0.0
        %1355 = vmatpush.msra.mxu0 0.0
        %1356 = vmatpush.msra.mxu0 0.0
        %1357 = vmatpush.msra.mxu0 0.0
        %1358 = vmatpush.msra.mxu0 0.0
        %1359 = vmatpush.msra.mxu0 0.0
        %1360 = vmatpush.msra.mxu0 0.0
        %v1361 = vand.u32 %v1071, 4294901760
        %v1362 = vsub.f32 %v1071, %v1361
        %v1363 = vand.u32 %v1362, 4294901760
        %1364 = vmatpush.msra.mxu0 %v1363
        %v1365 = vand.u32 %v400, 4294901760
        %v1366 = vsub.f32 %v400, %v1365
        %v1367 = vand.u32 %v1366, 4294901760
        %1368 = vmatpush.msra.mxu0 %v1367
        %v1369 = vand.u32 %v1065, 4294901760
        %1370 = vmatmul.f32.gmra.mxu0 %v1369
        %v1371 = vpop.f32.mrf.mxu0
        %v1372 = vadd.f32 %v1345, %v1371
        %1373 = vdwg.mxu0
        %1374 = vmatpush.msra.mxu0 0.0
        %1375 = vmatpush.msra.mxu0 0.0
        %1376 = vmatpush.msra.mxu0 0.0
        %1377 = vmatpush.msra.mxu0 0.0
        %1378 = vmatpush.msra.mxu0 0.0
        %1379 = vmatpush.msra.mxu0 0.0
        %1380 = vmatpush.msra.mxu0 0.0
        %1381 = vmatpush.msra.mxu0 0.0
        %1382 = vmatpush.msra.mxu0 0.0
        %1383 = vmatpush.msra.mxu0 0.0
        %1384 = vmatpush.msra.mxu0 0.0
        %1385 = vmatpush.msra.mxu0 0.0
        %1386 = vmatpush.msra.mxu0 0.0
        %1387 = vmatpush.msra.mxu0 0.0
        %v1388 = vand.u32 %v1071, 4294901760
        %1389 = vmatpush.msra.mxu0 %v1388
        %v1390 = vand.u32 %v400, 4294901760
        %1391 = vmatpush.msra.mxu0 %v1390
        %v1392 = vand.u32 %v1065, 4294901760
        %1393 = vmatmul.f32.gmra.mxu0 %v1392
        %v1394 = vpop.f32.mrf.mxu0
        %v1395 = vadd.f32 %v1372, %v1394
        %1396 = vdwg.mxu0
        %1397 = vmatpush.msra.mxu0 0.0
        %1398 = vmatpush.msra.mxu0 0.0
        %1399 = vmatpush.msra.mxu0 0.0
        %1400 = vmatpush.msra.mxu0 0.0
        %1401 = vmatpush.msra.mxu0 0.0
        %1402 = vmatpush.msra.mxu0 0.0
        %1403 = vmatpush.msra.mxu0 0.0
        %1404 = vmatpush.msra.mxu0 0.0
        %1405 = vmatpush.msra.mxu0 0.0
        %1406 = vmatpush.msra.mxu0 0.0
        %1407 = vmatpush.msra.mxu0 0.0
        %1408 = vmatpush.msra.mxu0 0.0
        %1409 = vmatpush.msra.mxu0 0.0
        %1410 = vmatpush.msra.mxu0 0.0
        %v1411 = vand.u32 %v1074, 4294901760
        %1412 = vmatpush.msra.mxu0 %v1411
        %v1413 = vand.u32 %v401, 4294901760
        %1414 = vmatpush.msra.mxu0 %v1413
        %v1415 = vand.u32 %v1065, 4294901760
        %v1416 = vsub.f32 %v1065, %v1415
        %v1417 = vand.u32 %v1416, 4294901760
        %v1418 = vsub.f32 %v1416, %v1417
        %v1419 = vand.u32 %v1418, 4294901760
        %1420 = vmatmul.f32.gmra.mxu0 %v1419
        %v1421 = vpop.f32.mrf.mxu0
        %v1422 = vadd.f32 %v1063, %v1421
        %1423 = vdwg.mxu0
        %1424 = vmatpush.msra.mxu0 0.0
        %1425 = vmatpush.msra.mxu0 0.0
        %1426 = vmatpush.msra.mxu0 0.0
        %1427 = vmatpush.msra.mxu0 0.0
        %1428 = vmatpush.msra.mxu0 0.0
        %1429 = vmatpush.msra.mxu0 0.0
        %1430 = vmatpush.msra.mxu0 0.0
        %1431 = vmatpush.msra.mxu0 0.0
        %1432 = vmatpush.msra.mxu0 0.0
        %1433 = vmatpush.msra.mxu0 0.0
        %1434 = vmatpush.msra.mxu0 0.0
        %1435 = vmatpush.msra.mxu0 0.0
        %1436 = vmatpush.msra.mxu0 0.0
        %1437 = vmatpush.msra.mxu0 0.0
        %v1438 = vand.u32 %v1074, 4294901760
        %v1439 = vsub.f32 %v1074, %v1438
        %v1440 = vand.u32 %v1439, 4294901760
        %v1441 = vsub.f32 %v1439, %v1440
        %v1442 = vand.u32 %v1441, 4294901760
        %1443 = vmatpush.msra.mxu0 %v1442
        %v1444 = vand.u32 %v401, 4294901760
        %v1445 = vsub.f32 %v401, %v1444
        %v1446 = vand.u32 %v1445, 4294901760
        %v1447 = vsub.f32 %v1445, %v1446
        %v1448 = vand.u32 %v1447, 4294901760
        %1449 = vmatpush.msra.mxu0 %v1448
        %v1450 = vand.u32 %v1065, 4294901760
        %1451 = vmatmul.f32.gmra.mxu0 %v1450
        %v1452 = vpop.f32.mrf.mxu0
        %v1453 = vadd.f32 %v1422, %v1452
        %1454 = vdwg.mxu0
        %1455 = vmatpush.msra.mxu0 0.0
        %1456 = vmatpush.msra.mxu0 0.0
        %1457 = vmatpush.msra.mxu0 0.0
        %1458 = vmatpush.msra.mxu0 0.0
        %1459 = vmatpush.msra.mxu0 0.0
        %1460 = vmatpush.msra.mxu0 0.0
        %1461 = vmatpush.msra.mxu0 0.0
        %1462 = vmatpush.msra.mxu0 0.0
        %1463 = vmatpush.msra.mxu0 0.0
        %1464 = vmatpush.msra.mxu0 0.0
        %1465 = vmatpush.msra.mxu0 0.0
        %1466 = vmatpush.msra.mxu0 0.0
        %1467 = vmatpush.msra.mxu0 0.0
        %1468 = vmatpush.msra.mxu0 0.0
        %v1469 = vand.u32 %v1074, 4294901760
        %v1470 = vsub.f32 %v1074, %v1469
        %1471 = vmatpush.msra.mxu0 %v1470
        %v1472 = vand.u32 %v401, 4294901760
        %v1473 = vsub.f32 %v401, %v1472
        %1474 = vmatpush.msra.mxu0 %v1473
        %v1475 = vand.u32 %v1065, 4294901760
        %v1476 = vsub.f32 %v1065, %v1475
        %1477 = vmatmul.f32.gmra.mxu0 %v1476
        %v1478 = vpop.f32.mrf.mxu0
        %v1479 = vadd.f32 %v1453, %v1478
        %1480 = vdwg.mxu0
        %1481 = vmatpush.msra.mxu0 0.0
        %1482 = vmatpush.msra.mxu0 0.0
        %1483 = vmatpush.msra.mxu0 0.0
        %1484 = vmatpush.msra.mxu0 0.0
        %1485 = vmatpush.msra.mxu0 0.0
        %1486 = vmatpush.msra.mxu0 0.0
        %1487 = vmatpush.msra.mxu0 0.0
        %1488 = vmatpush.msra.mxu0 0.0
        %1489 = vmatpush.msra.mxu0 0.0
        %1490 = vmatpush.msra.mxu0 0.0
        %1491 = vmatpush.msra.mxu0 0.0
        %1492 = vmatpush.msra.mxu0 0.0
        %1493 = vmatpush.msra.mxu0 0.0
        %1494 = vmatpush.msra.mxu0 0.0
        %v1495 = vand.u32 %v1074, 4294901760
        %1496 = vmatpush.msra.mxu0 %v1495
        %v1497 = vand.u32 %v401, 4294901760
        %1498 = vmatpush.msra.mxu0 %v1497
        %v1499 = vand.u32 %v1065, 4294901760
        %v1500 = vsub.f32 %v1065, %v1499
        %v1501 = vand.u32 %v1500, 4294901760
        %1502 = vmatmul.f32.gmra.mxu0 %v1501
        %v1503 = vpop.f32.mrf.mxu0
        %v1504 = vadd.f32 %v1479, %v1503
        %1505 = vdwg.mxu0
        %1506 = vmatpush.msra.mxu0 0.0
        %1507 = vmatpush.msra.mxu0 0.0
        %1508 = vmatpush.msra.mxu0 0.0
        %1509 = vmatpush.msra.mxu0 0.0
        %1510 = vmatpush.msra.mxu0 0.0
        %1511 = vmatpush.msra.mxu0 0.0
        %1512 = vmatpush.msra.mxu0 0.0
        %1513 = vmatpush.msra.mxu0 0.0
        %1514 = vmatpush.msra.mxu0 0.0
        %1515 = vmatpush.msra.mxu0 0.0
        %1516 = vmatpush.msra.mxu0 0.0
        %1517 = vmatpush.msra.mxu0 0.0
        %1518 = vmatpush.msra.mxu0 0.0
        %1519 = vmatpush.msra.mxu0 0.0
        %v1520 = vand.u32 %v1074, 4294901760
        %v1521 = vsub.f32 %v1074, %v1520
        %v1522 = vand.u32 %v1521, 4294901760
        %1523 = vmatpush.msra.mxu0 %v1522
        %v1524 = vand.u32 %v401, 4294901760
        %v1525 = vsub.f32 %v401, %v1524
        %v1526 = vand.u32 %v1525, 4294901760
        %1527 = vmatpush.msra.mxu0 %v1526
        %v1528 = vand.u32 %v1065, 4294901760
        %1529 = vmatmul.f32.gmra.mxu0 %v1528
        %v1530 = vpop.f32.mrf.mxu0
        %v1531 = vadd.f32 %v1504, %v1530
        %1532 = vdwg.mxu0
        %1533 = vmatpush.msra.mxu0 0.0
        %1534 = vmatpush.msra.mxu0 0.0
        %1535 = vmatpush.msra.mxu0 0.0
        %1536 = vmatpush.msra.mxu0 0.0
        %1537 = vmatpush.msra.mxu0 0.0
        %1538 = vmatpush.msra.mxu0 0.0
        %1539 = vmatpush.msra.mxu0 0.0
        %1540 = vmatpush.msra.mxu0 0.0
        %1541 = vmatpush.msra.mxu0 0.0
        %1542 = vmatpush.msra.mxu0 0.0
        %1543 = vmatpush.msra.mxu0 0.0
        %1544 = vmatpush.msra.mxu0 0.0
        %1545 = vmatpush.msra.mxu0 0.0
        %1546 = vmatpush.msra.mxu0 0.0
        %v1547 = vand.u32 %v1074, 4294901760
        %1548 = vmatpush.msra.mxu0 %v1547
        %v1549 = vand.u32 %v401, 4294901760
        %1550 = vmatpush.msra.mxu0 %v1549
        %v1551 = vand.u32 %v1065, 4294901760
        %1552 = vmatmul.f32.gmra.mxu0 %v1551
        %v1553 = vpop.f32.mrf.mxu0
        %v1554 = vadd.f32 %v1531, %v1553
        %1555 = vdwg.mxu0
        %1556 = vmatpush.msra.mxu0 0.0
        %1557 = vmatpush.msra.mxu0 0.0
        %1558 = vmatpush.msra.mxu0 0.0
        %1559 = vmatpush.msra.mxu0 0.0
        %1560 = vmatpush.msra.mxu0 0.0
        %1561 = vmatpush.msra.mxu0 0.0
        %1562 = vmatpush.msra.mxu0 0.0
        %1563 = vmatpush.msra.mxu0 0.0
        %1564 = vmatpush.msra.mxu0 0.0
        %1565 = vmatpush.msra.mxu0 0.0
        %1566 = vmatpush.msra.mxu0 0.0
        %1567 = vmatpush.msra.mxu0 0.0
        %1568 = vmatpush.msra.mxu0 0.0
        %1569 = vmatpush.msra.mxu0 0.0
        %v1570 = vand.u32 %v1077, 4294901760
        %1571 = vmatpush.msra.mxu0 %v1570
        %v1572 = vand.u32 %v402, 4294901760
        %1573 = vmatpush.msra.mxu0 %v1572
        %v1574 = vand.u32 %v1065, 4294901760
        %v1575 = vsub.f32 %v1065, %v1574
        %v1576 = vand.u32 %v1575, 4294901760
        %v1577 = vsub.f32 %v1575, %v1576
        %v1578 = vand.u32 %v1577, 4294901760
        %1579 = vmatmul.f32.gmra.mxu0 %v1578
        %v1580 = vpop.f32.mrf.mxu0
        %v1581 = vadd.f32 %v1063, %v1580
        %1582 = vdwg.mxu0
        %1583 = vmatpush.msra.mxu0 0.0
        %1584 = vmatpush.msra.mxu0 0.0
        %1585 = vmatpush.msra.mxu0 0.0
        %1586 = vmatpush.msra.mxu0 0.0
        %1587 = vmatpush.msra.mxu0 0.0
        %1588 = vmatpush.msra.mxu0 0.0
        %1589 = vmatpush.msra.mxu0 0.0
        %1590 = vmatpush.msra.mxu0 0.0
        %1591 = vmatpush.msra.mxu0 0.0
        %1592 = vmatpush.msra.mxu0 0.0
        %1593 = vmatpush.msra.mxu0 0.0
        %1594 = vmatpush.msra.mxu0 0.0
        %1595 = vmatpush.msra.mxu0 0.0
        %1596 = vmatpush.msra.mxu0 0.0
        %v1597 = vand.u32 %v1077, 4294901760
        %v1598 = vsub.f32 %v1077, %v1597
        %v1599 = vand.u32 %v1598, 4294901760
        %v1600 = vsub.f32 %v1598, %v1599
        %v1601 = vand.u32 %v1600, 4294901760
        %1602 = vmatpush.msra.mxu0 %v1601
        %v1603 = vand.u32 %v402, 4294901760
        %v1604 = vsub.f32 %v402, %v1603
        %v1605 = vand.u32 %v1604, 4294901760
        %v1606 = vsub.f32 %v1604, %v1605
        %v1607 = vand.u32 %v1606, 4294901760
        %1608 = vmatpush.msra.mxu0 %v1607
        %v1609 = vand.u32 %v1065, 4294901760
        %1610 = vmatmul.f32.gmra.mxu0 %v1609
        %v1611 = vpop.f32.mrf.mxu0
        %v1612 = vadd.f32 %v1581, %v1611
        %1613 = vdwg.mxu0
        %1614 = vmatpush.msra.mxu0 0.0
        %1615 = vmatpush.msra.mxu0 0.0
        %1616 = vmatpush.msra.mxu0 0.0
        %1617 = vmatpush.msra.mxu0 0.0
        %1618 = vmatpush.msra.mxu0 0.0
        %1619 = vmatpush.msra.mxu0 0.0
        %1620 = vmatpush.msra.mxu0 0.0
        %1621 = vmatpush.msra.mxu0 0.0
        %1622 = vmatpush.msra.mxu0 0.0
        %1623 = vmatpush.msra.mxu0 0.0
        %1624 = vmatpush.msra.mxu0 0.0
        %1625 = vmatpush.msra.mxu0 0.0
        %1626 = vmatpush.msra.mxu0 0.0
        %1627 = vmatpush.msra.mxu0 0.0
        %v1628 = vand.u32 %v1077, 4294901760
        %v1629 = vsub.f32 %v1077, %v1628
        %1630 = vmatpush.msra.mxu0 %v1629
        %v1631 = vand.u32 %v402, 4294901760
        %v1632 = vsub.f32 %v402, %v1631
        %1633 = vmatpush.msra.mxu0 %v1632
        %v1634 = vand.u32 %v1065, 4294901760
        %v1635 = vsub.f32 %v1065, %v1634
        %1636 = vmatmul.f32.gmra.mxu0 %v1635
        %v1637 = vpop.f32.mrf.mxu0
        %v1638 = vadd.f32 %v1612, %v1637
        %1639 = vdwg.mxu0
        %1640 = vmatpush.msra.mxu0 0.0
        %1641 = vmatpush.msra.mxu0 0.0
        %1642 = vmatpush.msra.mxu0 0.0
        %1643 = vmatpush.msra.mxu0 0.0
        %1644 = vmatpush.msra.mxu0 0.0
        %1645 = vmatpush.msra.mxu0 0.0
        %1646 = vmatpush.msra.mxu0 0.0
        %1647 = vmatpush.msra.mxu0 0.0
        %1648 = vmatpush.msra.mxu0 0.0
        %1649 = vmatpush.msra.mxu0 0.0
        %1650 = vmatpush.msra.mxu0 0.0
        %1651 = vmatpush.msra.mxu0 0.0
        %1652 = vmatpush.msra.mxu0 0.0
        %1653 = vmatpush.msra.mxu0 0.0
        %v1654 = vand.u32 %v1077, 4294901760
        %1655 = vmatpush.msra.mxu0 %v1654
        %v1656 = vand.u32 %v402, 4294901760
        %1657 = vmatpush.msra.mxu0 %v1656
        %v1658 = vand.u32 %v1065, 4294901760
        %v1659 = vsub.f32 %v1065, %v1658
        %v1660 = vand.u32 %v1659, 4294901760
        %1661 = vmatmul.f32.gmra.mxu0 %v1660
        %v1662 = vpop.f32.mrf.mxu0
        %v1663 = vadd.f32 %v1638, %v1662
        %1664 = vdwg.mxu0
        %1665 = vmatpush.msra.mxu0 0.0
        %1666 = vmatpush.msra.mxu0 0.0
        %1667 = vmatpush.msra.mxu0 0.0
        %1668 = vmatpush.msra.mxu0 0.0
        %1669 = vmatpush.msra.mxu0 0.0
        %1670 = vmatpush.msra.mxu0 0.0
        %1671 = vmatpush.msra.mxu0 0.0
        %1672 = vmatpush.msra.mxu0 0.0
        %1673 = vmatpush.msra.mxu0 0.0
        %1674 = vmatpush.msra.mxu0 0.0
        %1675 = vmatpush.msra.mxu0 0.0
        %1676 = vmatpush.msra.mxu0 0.0
        %1677 = vmatpush.msra.mxu0 0.0
        %1678 = vmatpush.msra.mxu0 0.0
        %v1679 = vand.u32 %v1077, 4294901760
        %v1680 = vsub.f32 %v1077, %v1679
        %v1681 = vand.u32 %v1680, 4294901760
        %1682 = vmatpush.msra.mxu0 %v1681
        %v1683 = vand.u32 %v402, 4294901760
        %v1684 = vsub.f32 %v402, %v1683
        %v1685 = vand.u32 %v1684, 4294901760
        %1686 = vmatpush.msra.mxu0 %v1685
        %v1687 = vand.u32 %v1065, 4294901760
        %1688 = vmatmul.f32.gmra.mxu0 %v1687
        %v1689 = vpop.f32.mrf.mxu0
        %v1690 = vadd.f32 %v1663, %v1689
        %1691 = vdwg.mxu0
        %1692 = vmatpush.msra.mxu0 0.0
        %1693 = vmatpush.msra.mxu0 0.0
        %1694 = vmatpush.msra.mxu0 0.0
        %1695 = vmatpush.msra.mxu0 0.0
        %1696 = vmatpush.msra.mxu0 0.0
        %1697 = vmatpush.msra.mxu0 0.0
        %1698 = vmatpush.msra.mxu0 0.0
        %1699 = vmatpush.msra.mxu0 0.0
        %1700 = vmatpush.msra.mxu0 0.0
        %1701 = vmatpush.msra.mxu0 0.0
        %1702 = vmatpush.msra.mxu0 0.0
        %1703 = vmatpush.msra.mxu0 0.0
        %1704 = vmatpush.msra.mxu0 0.0
        %1705 = vmatpush.msra.mxu0 0.0
        %v1706 = vand.u32 %v1077, 4294901760
        %1707 = vmatpush.msra.mxu0 %v1706
        %v1708 = vand.u32 %v402, 4294901760
        %1709 = vmatpush.msra.mxu0 %v1708
        %v1710 = vand.u32 %v1065, 4294901760
        %1711 = vmatmul.f32.gmra.mxu0 %v1710
        %v1712 = vpop.f32.mrf.mxu0
        %v1713 = vadd.f32 %v1690, %v1712
        %1714 = vdwg.mxu0
        %v1719 = vrot.slane %v1236, 7
        %v1720 = vrot.slane %v1395, 7
        %v1721 = vrot.slane %v1554, 7
        %v1722 = vrot.slane %v1713, 7
        %vm1727 = vcmask 1040384
        %v1728 = vsel %vm1727, %v583, %v1719
        %v1729 = vsel %vm1727, %v742, %v1720
        %v1730 = vsel %vm1727, %v901, %v1721
        %v1731 = vsel %vm1727, %v1060, %v1722
        %v1736 = vrot.slane %v1729, 6
        %v1737 = vrot.slane %v1730, 4
        %v1738 = vrot.slane %v1731, 2
        %vm1739 = vcmask 1041408
        %v1740 = vsel %vm1739, %v1728, %v1736
        %vm1741 = vcmask 1045508
        %v1742 = vsel %vm1741, %v1737, %v1738
        %vm1743 = vcmask 1043456
        %v1744 = vsel %vm1743, %v1740, %v1742
        %1746 = vst [vmem:[%s190] sm:$0xff] %v1744
        %s1747 = sand.u32 %s94, 1
        %s1748 = scalar_lea.sflag [#allocation3], %s1747
        %s1749 = sand.u32 %s94, 1
        %s1750 = smul.addr %s1749, 8
        %s1751 = scalar_lea.vmem [#allocation5], %s1750
        // Predicated region
        $region37: #{tpu_custom_call.1} parent=31 // pred_check
          %p1752 = pneg %p104
        $region38: #{tpu_custom_call.1} parent=31 // pred_check_branch
          %1754 = sbr.rel (%p1752) target = $region40
        $region39: #{tpu_custom_call.1} parent=31 // pred_region
          %s1755 = smul.u32 4, %s18
          %1757 = vsyncadd %s1748, 0
          %s1758 = smul.addr %s1755, 2
          %s1759 = scalar_lea.hbm %s3, %s1758
          %s1761 = sshll.u32 %s1751, 4
          %s1762 = int_to_ptr.vmem [resolvable:$true] %s1761
          %s1763 = sshll.u32 %s1759, 4
          %s1764 = int_to_ptr.hbm [resolvable:$true] %s1763
          %1766 = dma.vmem_to_hbm [thread:$0]  %s1762, 128, %s1764, %s1748
        $region40: #{tpu_custom_call.1} parent=31 // pred_fallthru
          _
      $region32: #{tpu_custom_call.1} parent=5 // pred_fallthru
        _
      %p1767 = scmp.le.s32.totalorder 2, %s13
      // Predicated region
      $region41: #{tpu_custom_call.1} parent=5 // pred_check
        %p1768 = pneg %p1767
      $region42: #{tpu_custom_call.1} parent=5 // pred_check_branch
        %1770 = sbr.rel (%p1768) target = $region44
      $region43: #{tpu_custom_call.1} parent=5 // pred_region
        %s1771 = ssub.s32 %s13, 2
        // Predicated region
        $region45: #{tpu_custom_call.1} parent=43 // pred_check
          %p1772 = pneg %p110
        $region46: #{tpu_custom_call.1} parent=43 // pred_check_branch
          %1774 = sbr.rel (%p1772) target = $region48
        $region47: #{tpu_custom_call.1} parent=43 // pred_region
          %s1775 = sand.u32 %s95, 1
          %s1776 = scalar_lea.sflag [#allocation3], %s1775
          %s1777 = sand.u32 %s95, 1
          %s1778 = smul.addr %s1777, 8
          %s1779 = scalar_lea.vmem [#allocation5], %s1778
          %1781 = dma.done %s1776, 128
        $region48: #{tpu_custom_call.1} parent=43 // pred_fallthru
          _
      $region44: #{tpu_custom_call.1} parent=5 // pred_fallthru
        _
    $region6: #{tpu_custom_call.1} parent=1 // loop_footer
      %s17 = sadd.s32 1, %s13
    $region7: #{tpu_custom_call.1} parent=1 // loop_footer_branch
      %12 = sbr.rel target = $region3
    $region8: #{tpu_custom_call.1} parent=1 // loop_exit
      _
    %1782 = vsyncpa [#allocation3], 1
    %s1783 = scalar_lea.sflag [#allocation3], 1
    %1784 = vsyncpa %s1783, 1
    %1785 = vsyncpa [#allocation4], 1
    %s1786 = scalar_lea.sflag [#allocation4], 1
    %1787 = vsyncpa %s1786, 1

</llo_original>
